<compile_context>
chip_gen: v5e
topology: v5e:2x2
jax: 0.10.0
libtpu: 0.0.40
codegen_flags: <defaults>
</compile_context>

<pallas_src>
import functools

import jax
import jax.numpy as jnp
from jax.experimental import pallas as pl
from jax.experimental.pallas import tpu as pltpu

EPS = 1e-5


# ---------------------------------------------------------------------------
# Fused kernel: one batch element per grid step.
#   x_ref : (1, H*W, Cin)   bf16
#   w*    : conv weights    bf16      s*/b* : folded BN scale/shift, f32, (1, C)
#   o_ref : (H*W, Cout)     f32
#   xp_ref: VMEM scratch (H+2p, pad_l+W+p, Cexp) f32 -- zero-halo depthwise input
# ---------------------------------------------------------------------------
def _block_kernel(x_ref, w1_ref, s1_ref, b1_ref,
                  w2_ref, s2_ref, b2_ref,
                  w3_ref, s3_ref, b3_ref,
                  ws_ref, ss_ref, bs_ref,
                  o_ref, xp_ref, *, k, H, W, pad_l):
    p = k // 2
    Cexp = w1_ref.shape[1]

    # ---- stage 1: 1x1 expand conv + folded BN + ReLU (bf16 MXU, f32 accumulate) ----
    x2d = x_ref[0]                                                   # (H*W, Cin) bf16
    o1 = jnp.dot(x2d, w1_ref[...], preferred_element_type=jnp.float32)
    o1 = jnp.maximum(o1 * s1_ref[...] + b1_ref[...], 0.0)           # (H*W, Cexp) f32

    # ---- stage 2: depthwise kxk conv + folded BN + ReLU, halo kept in VMEM ----
    # Zero the whole scratch every step (cheap, and correct under megacore where
    # grid steps are split across cores), then write the interior tile-aligned
    # (left halo padded to pad_l, a multiple of 8 sublanes).
    xp_ref[...] = jnp.zeros_like(xp_ref)
    xp_ref[p:p + H, pad_l:pad_l + W, :] = o1.reshape(H, W, Cexp)
    xp = xp_ref[...]                                                 # (H+2p, pad_l+W+p, Cexp)

    w2f = w2_ref[...].astype(jnp.float32)                            # hoisted out of tap loop
    acc = None
    for kh in range(k):                                              # static unroll (k*k taps)
        for kw in range(k):
            c0 = pad_l - p + kw
            patch = xp[kh:kh + H, c0:c0 + W, :]                      # (H, W, Cexp)
            term = patch * w2f[kh:kh + 1, kw:kw + 1, :]
            acc = term if acc is None else acc + term

    o2 = acc.reshape(H * W, Cexp)
    o2 = jnp.maximum(o2 * s2_ref[...] + b2_ref[...], 0.0)           # f32 VPU (v5e-safe)

    # ---- stage 3: 1x1 project conv + BN, fused with the 1x1 conv + BN shortcut ----
    main = jnp.dot(o2, w3_ref[...].astype(jnp.float32),
                   preferred_element_type=jnp.float32)
    main = main * s3_ref[...] + b3_ref[...]
    sc = jnp.dot(x2d, ws_ref[...], preferred_element_type=jnp.float32)
    sc = sc * ss_ref[...] + bs_ref[...]
    o_ref[...] = (main + sc).astype(o_ref.dtype)


# ---------------------------------------------------------------------------
# Parameter setup (deterministic, synthetic) + wrapper
# ---------------------------------------------------------------------------
def fold_bn(gamma, beta, mean, var):
    scale = gamma / jnp.sqrt(var + EPS)
    shift = beta - mean * scale
    return scale, shift


def init_params(key, k, cin, cexp, cout):
    keys = jax.random.split(key, 20)

    def bn(k0, k1, k2, k3, c):
        gamma = 1.0 + 0.1 * jax.random.normal(k0, (c,), jnp.float32)
        beta = 0.1 * jax.random.normal(k1, (c,), jnp.float32)
        mean = 0.1 * jax.random.normal(k2, (c,), jnp.float32)
        var = 0.5 + jnp.abs(0.1 * jax.random.normal(k3, (c,), jnp.float32))
        return fold_bn(gamma, beta, mean, var)

    p = {}
    p["w1"] = 0.2 * jax.random.normal(keys[0], (cin, cexp), jnp.float32)    # 1x1 expand
    p["s1"], p["b1"] = bn(keys[1], keys[2], keys[3], keys[4], cexp)
    p["w2"] = 0.2 * jax.random.normal(keys[5], (k, k, cexp), jnp.float32)    # depthwise
    p["s2"], p["b2"] = bn(keys[6], keys[7], keys[8], keys[9], cexp)
    p["w3"] = 0.2 * jax.random.normal(keys[10], (cexp, cout), jnp.float32)   # 1x1 project
    p["s3"], p["b3"] = bn(keys[11], keys[12], keys[13], keys[14], cout)
    p["ws"] = 0.2 * jax.random.normal(keys[15], (cin, cout), jnp.float32)    # shortcut 1x1
    p["ss"], p["bs"] = bn(keys[16], keys[17], keys[18], keys[19], cout)
    return p


def block_forward(x_nchw, params, k=3, stride=1):
    # Fused residual path is only valid for stride == 1 (as in the PyTorch module's
    # `out + shortcut(x)` branch).  Guard explicitly.
    assert stride == 1, "only the stride==1 (residual) path is implemented"
    # TODO(synk): stride>1 variant (no residual add) and the optional SE module are
    # not implemented in this fused kernel (semodule is None in this config).

    x = jnp.transpose(x_nchw, (0, 2, 3, 1))                  # NCHW -> NHWC
    N, H, W, Cin = x.shape
    Cexp = params["w1"].shape[1]
    Cout = params["w3"].shape[1]
    p = k // 2
    pad_l = ((p + 7) // 8) * 8                               # sublane-aligned left halo

    # bf16 for HBM<->VMEM traffic; f32 compute inside the kernel.
    xb = x.astype(jnp.bfloat16).reshape(N, H * W, Cin)
    w1 = params["w1"].astype(jnp.bfloat16)
    w2 = params["w2"].astype(jnp.bfloat16)
    w3 = params["w3"].astype(jnp.bfloat16)
    ws = params["ws"].astype(jnp.bfloat16)
    s1 = params["s1"].reshape(1, Cexp); b1 = params["b1"].reshape(1, Cexp)
    s2 = params["s2"].reshape(1, Cexp); b2 = params["b2"].reshape(1, Cexp)
    s3 = params["s3"].reshape(1, Cout); b3 = params["b3"].reshape(1, Cout)
    ss = params["ss"].reshape(1, Cout); bs = params["bs"].reshape(1, Cout)

    def const_spec(shape):
        nd = len(shape)
        return pl.BlockSpec(shape, lambda n, _nd=nd: (0,) * _nd)

    out2d = pl.pallas_call(
        functools.partial(_block_kernel, k=k, H=H, W=W, pad_l=pad_l),
        out_shape=jax.ShapeDtypeStruct((N * H * W, Cout), jnp.float32),
        grid=(N,),
        in_specs=[
            pl.BlockSpec((1, H * W, Cin), lambda n: (n, 0, 0)),     # per-batch tile
            const_spec(w1.shape), const_spec(s1.shape), const_spec(b1.shape),
            const_spec(w2.shape), const_spec(s2.shape), const_spec(b2.shape),
            const_spec(w3.shape), const_spec(s3.shape), const_spec(b3.shape),
            const_spec(ws.shape), const_spec(ss.shape), const_spec(bs.shape),
        ],
        out_specs=pl.BlockSpec((H * W, Cout), lambda n: (n, 0)),
        scratch_shapes=[pltpu.VMEM((H + 2 * p, pad_l + W + p, Cexp), jnp.float32)],
        compiler_params=pltpu.CompilerParams(
            dimension_semantics=("parallel",)),                     # v7x: 2 TCs split batch
    )(xb, w1, s1, b1, w2, s2, b2, w3, s3, b3, ws, ss, bs)

    out = out2d.reshape(N, H, W, Cout)
    return jnp.transpose(out, (0, 3, 1, 2))                  # NHWC -> NCHW


# -------------------------- pure-JAX reference -----------------------------
def block_reference(x_nchw, params, k=3, stride=1):
    assert stride == 1
    x = jnp.transpose(x_nchw, (0, 2, 3, 1)).astype(jnp.float32)
    # Mirror the kernel's bf16 storage rounding of activations/weights.
    xb = x.astype(jnp.bfloat16).astype(jnp.float32)
    w1 = params["w1"].astype(jnp.bfloat16).astype(jnp.float32)
    w2 = params["w2"].astype(jnp.bfloat16).astype(jnp.float32)
    w3 = params["w3"].astype(jnp.bfloat16).astype(jnp.float32)
    ws = params["ws"].astype(jnp.bfloat16).astype(jnp.float32)

    # expand 1x1 + BN + ReLU
    o = jnp.einsum("nhwc,cd->nhwd", xb, w1) * params["s1"] + params["b1"]
    o = jnp.maximum(o, 0.0)
    # depthwise kxk, SAME padding, stride 1 (explicit pad + shifted adds; no lax.conv)
    p = k // 2
    N, H, W, Cexp = o.shape
    op = jnp.pad(o, ((0, 0), (p, p), (p, p), (0, 0)))
    acc = jnp.zeros_like(o)
    for kh in range(k):
        for kw in range(k):
            acc = acc + op[:, kh:kh + H, kw:kw + W, :] * w2[kh, kw, :]
    o = jnp.maximum(acc * params["s2"] + params["b2"], 0.0)
    # project 1x1 + BN
    o = jnp.einsum("nhwc,cd->nhwd", o, w3) * params["s3"] + params["b3"]
    # shortcut (1x1 conv + BN) + add
    sc = jnp.einsum("nhwc,cd->nhwd", xb, ws) * params["ss"] + params["bs"]
    o = o + sc
    return jnp.transpose(o, (0, 3, 1, 2))


if __name__ == "__main__":
    # Block(kernel_size=3, in_size=4, expand_size=16, out_size=8,
    #       nolinear=ReLU, semodule=None, stride=1)
    K, CIN, CEXP, COUT, STRIDE = 3, 4, 16, 8, 1
    N, H, W = 2, 16, 16

    key = jax.random.PRNGKey(0)
    kx, kp = jax.random.split(key)
    x = jax.random.normal(kx, (N, CIN, H, W), jnp.float32)   # PyTorch-style NCHW input
    params = init_params(kp, K, CIN, CEXP, COUT)

    out = jax.block_until_ready(block_forward(x, params, k=K, stride=STRIDE))
    ref = jax.block_until_ready(block_reference(x, params, k=K, stride=STRIDE))

    assert out.shape == (N, COUT, H, W), out.shape
    assert jnp.allclose(out, ref, rtol=1e-2, atol=1e-2), \
        float(jnp.max(jnp.abs(out - ref)))

    print("KERNEL_OK")
</pallas_src>

<mosaic_0001>
module attributes {stable_mosaic.version = 11 : i64} {
  func.func @_block_kernel(%arg0: i32, %arg1: memref<1x256x4xbf16, #tpu.memory_space<vmem>>, %arg2: memref<4x16xbf16, #tpu.memory_space<vmem>>, %arg3: memref<1x16xf32, #tpu.memory_space<vmem>>, %arg4: memref<1x16xf32, #tpu.memory_space<vmem>>, %arg5: memref<3x3x16xbf16, #tpu.memory_space<vmem>>, %arg6: memref<1x16xf32, #tpu.memory_space<vmem>>, %arg7: memref<1x16xf32, #tpu.memory_space<vmem>>, %arg8: memref<16x8xbf16, #tpu.memory_space<vmem>>, %arg9: memref<1x8xf32, #tpu.memory_space<vmem>>, %arg10: memref<1x8xf32, #tpu.memory_space<vmem>>, %arg11: memref<4x8xbf16, #tpu.memory_space<vmem>>, %arg12: memref<1x8xf32, #tpu.memory_space<vmem>>, %arg13: memref<1x8xf32, #tpu.memory_space<vmem>>, %arg14: memref<256x8xf32, #tpu.memory_space<vmem>>, %arg15: memref<18x25x16xf32, #tpu.memory_space<vmem>>) attributes {dimension_semantics = [#tpu.dimension_semantics<parallel>], iteration_bounds = array<i64: 2>, scalar_prefetch = 0 : i64, scratch_operands = 1 : i64, tpu.core_type = #tpu.core_type<tc>, window_params = [{transform_indices = @transform_0, window_bounds = array<i64: 1, 256, 4>}, {pipeline_mode = #tpu.pipeline_mode<synchronous>, transform_indices = @transform_1, window_bounds = array<i64: 4, 16>}, {pipeline_mode = #tpu.pipeline_mode<synchronous>, transform_indices = @transform_2, window_bounds = array<i64: 1, 16>}, {pipeline_mode = #tpu.pipeline_mode<synchronous>, transform_indices = @transform_3, window_bounds = array<i64: 1, 16>}, {pipeline_mode = #tpu.pipeline_mode<synchronous>, transform_indices = @transform_4, window_bounds = array<i64: 3, 3, 16>}, {pipeline_mode = #tpu.pipeline_mode<synchronous>, transform_indices = @transform_5, window_bounds = array<i64: 1, 16>}, {pipeline_mode = #tpu.pipeline_mode<synchronous>, transform_indices = @transform_6, window_bounds = array<i64: 1, 16>}, {pipeline_mode = #tpu.pipeline_mode<synchronous>, transform_indices = @transform_7, window_bounds = array<i64: 16, 8>}, {pipeline_mode = #tpu.pipeline_mode<synchronous>, transform_indices = @transform_8, window_bounds = array<i64: 1, 8>}, {pipeline_mode = #tpu.pipeline_mode<synchronous>, transform_indices = @transform_9, window_bounds = array<i64: 1, 8>}, {pipeline_mode = #tpu.pipeline_mode<synchronous>, transform_indices = @transform_10, window_bounds = array<i64: 4, 8>}, {pipeline_mode = #tpu.pipeline_mode<synchronous>, transform_indices = @transform_11, window_bounds = array<i64: 1, 8>}, {pipeline_mode = #tpu.pipeline_mode<synchronous>, transform_indices = @transform_12, window_bounds = array<i64: 1, 8>}, {transform_indices = @transform_13, window_bounds = array<i64: 256, 8>}]} {
    %c0 = arith.constant 0 : index
    %c0_0 = arith.constant 0 : index
    %c0_1 = arith.constant 0 : index
    %0 = vector.load %arg1[%c0, %c0_0, %c0_1] : memref<1x256x4xbf16, #tpu.memory_space<vmem>>, vector<1x256x4xbf16>
    %1 = vector.shape_cast %0 : vector<1x256x4xbf16> to vector<256x4xbf16>
    %c0_2 = arith.constant 0 : index
    %c0_3 = arith.constant 0 : index
    %2 = vector.load %arg2[%c0_2, %c0_3] : memref<4x16xbf16, #tpu.memory_space<vmem>>, vector<4x16xbf16>
    %cst = arith.constant dense<0.000000e+00> : vector<256x16xf32>
    %3 = tpu.matmul %1, %2, %cst {dimension_numbers = #tpu.dot_dimension_numbers<[1], [0], [0], [1], [0, 0, 1, 1], [], []>} : vector<256x4xbf16>, vector<4x16xbf16>, vector<256x16xf32> -> vector<256x16xf32>
    %c0_4 = arith.constant 0 : index
    %c0_5 = arith.constant 0 : index
    %4 = vector.load %arg3[%c0_4, %c0_5] : memref<1x16xf32, #tpu.memory_space<vmem>>, vector<1x16xf32>
    %5 = vector.broadcast %4 : vector<1x16xf32> to vector<256x16xf32>
    %6 = arith.mulf %3, %5 : vector<256x16xf32>
    %c0_6 = arith.constant 0 : index
    %c0_7 = arith.constant 0 : index
    %7 = vector.load %arg4[%c0_6, %c0_7] : memref<1x16xf32, #tpu.memory_space<vmem>>, vector<1x16xf32>
    %8 = vector.broadcast %7 : vector<1x16xf32> to vector<256x16xf32>
    %9 = arith.addf %6, %8 : vector<256x16xf32>
    %cst_8 = arith.constant 0.000000e+00 : f32
    %10 = vector.broadcast %cst_8 : f32 to vector<256x16xf32>
    %11 = arith.maximumf %9, %10 : vector<256x16xf32>
    %cst_9 = arith.constant 0.000000e+00 : f32
    %12 = vector.broadcast %cst_9 : f32 to vector<18x25x16xf32>
    %c0_10 = arith.constant 0 : index
    %c0_11 = arith.constant 0 : index
    %c0_12 = arith.constant 0 : index
    %13 = vector.load %arg15[%c0_10, %c0_11, %c0_12] : memref<18x25x16xf32, #tpu.memory_space<vmem>>, vector<18x25x16xf32>
    tpu.vector_store %arg15[%c0_10, %c0_11, %c0_12], %12 {strides = array<i32>} : memref<18x25x16xf32, #tpu.memory_space<vmem>>, vector<18x25x16xf32>,
    %14 = vector.shape_cast %11 : vector<256x16xf32> to vector<16x16x16xf32>
    %c1 = arith.constant 1 : index
    %c8 = arith.constant 8 : index
    %c0_13 = arith.constant 0 : index
    %15 = vector.load %arg15[%c1, %c8, %c0_13] : memref<18x25x16xf32, #tpu.memory_space<vmem>>, vector<16x16x16xf32>
    tpu.vector_store %arg15[%c1, %c8, %c0_13], %14 {strides = array<i32>} : memref<18x25x16xf32, #tpu.memory_space<vmem>>, vector<16x16x16xf32>,
    %c0_14 = arith.constant 0 : index
    %c0_15 = arith.constant 0 : index
    %c0_16 = arith.constant 0 : index
    %16 = vector.load %arg15[%c0_14, %c0_15, %c0_16] : memref<18x25x16xf32, #tpu.memory_space<vmem>>, vector<18x25x16xf32>
    %c0_17 = arith.constant 0 : index
    %c0_18 = arith.constant 0 : index
    %c0_19 = arith.constant 0 : index
    %17 = vector.load %arg5[%c0_17, %c0_18, %c0_19] : memref<3x3x16xbf16, #tpu.memory_space<vmem>>, vector<3x3x16xbf16>
    %18 = arith.extf %17 : vector<3x3x16xbf16> to vector<3x3x16xf32>
    %19 = vector.extract_strided_slice %16 {offsets = [0, 7, 0], sizes = [16, 16, 16], strides = [1, 1, 1]} : vector<18x25x16xf32> to vector<16x16x16xf32>
    %20 = vector.extract_strided_slice %18 {offsets = [0, 0, 0], sizes = [1, 1, 16], strides = [1, 1, 1]} : vector<3x3x16xf32> to vector<1x1x16xf32>
    %21 = vector.broadcast %20 : vector<1x1x16xf32> to vector<16x16x16xf32>
    %22 = arith.mulf %19, %21 : vector<16x16x16xf32>
    %23 = vector.extract_strided_slice %16 {offsets = [0, 8, 0], sizes = [16, 16, 16], strides = [1, 1, 1]} : vector<18x25x16xf32> to vector<16x16x16xf32>
    %24 = vector.extract_strided_slice %18 {offsets = [0, 1, 0], sizes = [1, 1, 16], strides = [1, 1, 1]} : vector<3x3x16xf32> to vector<1x1x16xf32>
    %25 = vector.broadcast %24 : vector<1x1x16xf32> to vector<16x16x16xf32>
    %26 = arith.mulf %23, %25 : vector<16x16x16xf32>
    %27 = arith.addf %22, %26 : vector<16x16x16xf32>
    %28 = vector.extract_strided_slice %16 {offsets = [0, 9, 0], sizes = [16, 16, 16], strides = [1, 1, 1]} : vector<18x25x16xf32> to vector<16x16x16xf32>
    %29 = vector.extract_strided_slice %18 {offsets = [0, 2, 0], sizes = [1, 1, 16], strides = [1, 1, 1]} : vector<3x3x16xf32> to vector<1x1x16xf32>
    %30 = vector.broadcast %29 : vector<1x1x16xf32> to vector<16x16x16xf32>
    %31 = arith.mulf %28, %30 : vector<16x16x16xf32>
    %32 = arith.addf %27, %31 : vector<16x16x16xf32>
    %33 = vector.extract_strided_slice %16 {offsets = [1, 7, 0], sizes = [16, 16, 16], strides = [1, 1, 1]} : vector<18x25x16xf32> to vector<16x16x16xf32>
    %34 = vector.extract_strided_slice %18 {offsets = [1, 0, 0], sizes = [1, 1, 16], strides = [1, 1, 1]} : vector<3x3x16xf32> to vector<1x1x16xf32>
    %35 = vector.broadcast %34 : vector<1x1x16xf32> to vector<16x16x16xf32>
    %36 = arith.mulf %33, %35 : vector<16x16x16xf32>
    %37 = arith.addf %32, %36 : vector<16x16x16xf32>
    %38 = vector.extract_strided_slice %16 {offsets = [1, 8, 0], sizes = [16, 16, 16], strides = [1, 1, 1]} : vector<18x25x16xf32> to vector<16x16x16xf32>
    %39 = vector.extract_strided_slice %18 {offsets = [1, 1, 0], sizes = [1, 1, 16], strides = [1, 1, 1]} : vector<3x3x16xf32> to vector<1x1x16xf32>
    %40 = vector.broadcast %39 : vector<1x1x16xf32> to vector<16x16x16xf32>
    %41 = arith.mulf %38, %40 : vector<16x16x16xf32>
    %42 = arith.addf %37, %41 : vector<16x16x16xf32>
    %43 = vector.extract_strided_slice %16 {offsets = [1, 9, 0], sizes = [16, 16, 16], strides = [1, 1, 1]} : vector<18x25x16xf32> to vector<16x16x16xf32>
    %44 = vector.extract_strided_slice %18 {offsets = [1, 2, 0], sizes = [1, 1, 16], strides = [1, 1, 1]} : vector<3x3x16xf32> to vector<1x1x16xf32>
    %45 = vector.broadcast %44 : vector<1x1x16xf32> to vector<16x16x16xf32>
    %46 = arith.mulf %43, %45 : vector<16x16x16xf32>
    %47 = arith.addf %42, %46 : vector<16x16x16xf32>
    %48 = vector.extract_strided_slice %16 {offsets = [2, 7, 0], sizes = [16, 16, 16], strides = [1, 1, 1]} : vector<18x25x16xf32> to vector<16x16x16xf32>
    %49 = vector.extract_strided_slice %18 {offsets = [2, 0, 0], sizes = [1, 1, 16], strides = [1, 1, 1]} : vector<3x3x16xf32> to vector<1x1x16xf32>
    %50 = vector.broadcast %49 : vector<1x1x16xf32> to vector<16x16x16xf32>
    %51 = arith.mulf %48, %50 : vector<16x16x16xf32>
    %52 = arith.addf %47, %51 : vector<16x16x16xf32>
    %53 = vector.extract_strided_slice %16 {offsets = [2, 8, 0], sizes = [16, 16, 16], strides = [1, 1, 1]} : vector<18x25x16xf32> to vector<16x16x16xf32>
    %54 = vector.extract_strided_slice %18 {offsets = [2, 1, 0], sizes = [1, 1, 16], strides = [1, 1, 1]} : vector<3x3x16xf32> to vector<1x1x16xf32>
    %55 = vector.broadcast %54 : vector<1x1x16xf32> to vector<16x16x16xf32>
    %56 = arith.mulf %53, %55 : vector<16x16x16xf32>
    %57 = arith.addf %52, %56 : vector<16x16x16xf32>
    %58 = vector.extract_strided_slice %16 {offsets = [2, 9, 0], sizes = [16, 16, 16], strides = [1, 1, 1]} : vector<18x25x16xf32> to vector<16x16x16xf32>
    %59 = vector.extract_strided_slice %18 {offsets = [2, 2, 0], sizes = [1, 1, 16], strides = [1, 1, 1]} : vector<3x3x16xf32> to vector<1x1x16xf32>
    %60 = vector.broadcast %59 : vector<1x1x16xf32> to vector<16x16x16xf32>
    %61 = arith.mulf %58, %60 : vector<16x16x16xf32>
    %62 = arith.addf %57, %61 : vector<16x16x16xf32>
    %63 = vector.shape_cast %62 : vector<16x16x16xf32> to vector<256x16xf32>
    %c0_20 = arith.constant 0 : index
    %c0_21 = arith.constant 0 : index
    %64 = vector.load %arg6[%c0_20, %c0_21] : memref<1x16xf32, #tpu.memory_space<vmem>>, vector<1x16xf32>
    %65 = vector.broadcast %64 : vector<1x16xf32> to vector<256x16xf32>
    %66 = arith.mulf %63, %65 : vector<256x16xf32>
    %c0_22 = arith.constant 0 : index
    %c0_23 = arith.constant 0 : index
    %67 = vector.load %arg7[%c0_22, %c0_23] : memref<1x16xf32, #tpu.memory_space<vmem>>, vector<1x16xf32>
    %68 = vector.broadcast %67 : vector<1x16xf32> to vector<256x16xf32>
    %69 = arith.addf %66, %68 : vector<256x16xf32>
    %cst_24 = arith.constant 0.000000e+00 : f32
    %70 = vector.broadcast %cst_24 : f32 to vector<256x16xf32>
    %71 = arith.maximumf %69, %70 : vector<256x16xf32>
    %c0_25 = arith.constant 0 : index
    %c0_26 = arith.constant 0 : index
    %72 = vector.load %arg8[%c0_25, %c0_26] : memref<16x8xbf16, #tpu.memory_space<vmem>>, vector<16x8xbf16>
    %73 = arith.extf %72 : vector<16x8xbf16> to vector<16x8xf32>
    %cst_27 = arith.constant dense<0.000000e+00> : vector<256x8xf32>
    %74 = tpu.matmul %71, %73, %cst_27 {dimension_numbers = #tpu.dot_dimension_numbers<[1], [0], [0], [1], [0, 0, 1, 1], [], []>} : vector<256x16xf32>, vector<16x8xf32>, vector<256x8xf32> -> vector<256x8xf32>
    %c0_28 = arith.constant 0 : index
    %c0_29 = arith.constant 0 : index
    %75 = vector.load %arg9[%c0_28, %c0_29] : memref<1x8xf32, #tpu.memory_space<vmem>>, vector<1x8xf32>
    %76 = vector.broadcast %75 : vector<1x8xf32> to vector<256x8xf32>
    %77 = arith.mulf %74, %76 : vector<256x8xf32>
    %c0_30 = arith.constant 0 : index
    %c0_31 = arith.constant 0 : index
    %78 = vector.load %arg10[%c0_30, %c0_31] : memref<1x8xf32, #tpu.memory_space<vmem>>, vector<1x8xf32>
    %79 = vector.broadcast %78 : vector<1x8xf32> to vector<256x8xf32>
    %80 = arith.addf %77, %79 : vector<256x8xf32>
    %c0_32 = arith.constant 0 : index
    %c0_33 = arith.constant 0 : index
    %81 = vector.load %arg11[%c0_32, %c0_33] : memref<4x8xbf16, #tpu.memory_space<vmem>>, vector<4x8xbf16>
    %cst_34 = arith.constant dense<0.000000e+00> : vector<256x8xf32>
    %82 = tpu.matmul %1, %81, %cst_34 {dimension_numbers = #tpu.dot_dimension_numbers<[1], [0], [0], [1], [0, 0, 1, 1], [], []>} : vector<256x4xbf16>, vector<4x8xbf16>, vector<256x8xf32> -> vector<256x8xf32>
    %c0_35 = arith.constant 0 : index
    %c0_36 = arith.constant 0 : index
    %83 = vector.load %arg12[%c0_35, %c0_36] : memref<1x8xf32, #tpu.memory_space<vmem>>, vector<1x8xf32>
    %84 = vector.broadcast %83 : vector<1x8xf32> to vector<256x8xf32>
    %85 = arith.mulf %82, %84 : vector<256x8xf32>
    %c0_37 = arith.constant 0 : index
    %c0_38 = arith.constant 0 : index
    %86 = vector.load %arg13[%c0_37, %c0_38] : memref<1x8xf32, #tpu.memory_space<vmem>>, vector<1x8xf32>
    %87 = vector.broadcast %86 : vector<1x8xf32> to vector<256x8xf32>
    %88 = arith.addf %85, %87 : vector<256x8xf32>
    %89 = arith.addf %80, %88 : vector<256x8xf32>
    %c0_39 = arith.constant 0 : index
    %c0_40 = arith.constant 0 : index
    %90 = vector.load %arg14[%c0_39, %c0_40] : memref<256x8xf32, #tpu.memory_space<vmem>>, vector<256x8xf32>
    tpu.vector_store %arg14[%c0_39, %c0_40], %89 {strides = array<i32>} : memref<256x8xf32, #tpu.memory_space<vmem>>, vector<256x8xf32>,
    return
  }
  func.func @transform_0(%arg0: i32) -> (i32, i32, i32) {
    %c0_i32 = arith.constant 0 : i32
    %c0_i32_0 = arith.constant 0 : i32
    %c0_i32_1 = arith.constant 0 : i32
    return %arg0, %c0_i32, %c0_i32_0 : i32, i32, i32
  }
  func.func @transform_1(%arg0: i32) -> (i32, i32) {
    %c0_i32 = arith.constant 0 : i32
    %c0_i32_0 = arith.constant 0 : i32
    %c0_i32_1 = arith.constant 0 : i32
    return %c0_i32, %c0_i32_0 : i32, i32
  }
  func.func @transform_2(%arg0: i32) -> (i32, i32) {
    %c0_i32 = arith.constant 0 : i32
    %c0_i32_0 = arith.constant 0 : i32
    %c0_i32_1 = arith.constant 0 : i32
    return %c0_i32, %c0_i32_0 : i32, i32
  }
  func.func @transform_3(%arg0: i32) -> (i32, i32) {
    %c0_i32 = arith.constant 0 : i32
    %c0_i32_0 = arith.constant 0 : i32
    %c0_i32_1 = arith.constant 0 : i32
    return %c0_i32, %c0_i32_0 : i32, i32
  }
  func.func @transform_4(%arg0: i32) -> (i32, i32, i32) {
    %c0_i32 = arith.constant 0 : i32
    %c0_i32_0 = arith.constant 0 : i32
    %c0_i32_1 = arith.constant 0 : i32
    %c0_i32_2 = arith.constant 0 : i32
    return %c0_i32, %c0_i32_0, %c0_i32_1 : i32, i32, i32
  }
  func.func @transform_5(%arg0: i32) -> (i32, i32) {
    %c0_i32 = arith.constant 0 : i32
    %c0_i32_0 = arith.constant 0 : i32
    %c0_i32_1 = arith.constant 0 : i32
    return %c0_i32, %c0_i32_0 : i32, i32
  }
  func.func @transform_6(%arg0: i32) -> (i32, i32) {
    %c0_i32 = arith.constant 0 : i32
    %c0_i32_0 = arith.constant 0 : i32
    %c0_i32_1 = arith.constant 0 : i32
    return %c0_i32, %c0_i32_0 : i32, i32
  }
  func.func @transform_7(%arg0: i32) -> (i32, i32) {
    %c0_i32 = arith.constant 0 : i32
    %c0_i32_0 = arith.constant 0 : i32
    %c0_i32_1 = arith.constant 0 : i32
    return %c0_i32, %c0_i32_0 : i32, i32
  }
  func.func @transform_8(%arg0: i32) -> (i32, i32) {
    %c0_i32 = arith.constant 0 : i32
    %c0_i32_0 = arith.constant 0 : i32
    %c0_i32_1 = arith.constant 0 : i32
    return %c0_i32, %c0_i32_0 : i32, i32
  }
  func.func @transform_9(%arg0: i32) -> (i32, i32) {
    %c0_i32 = arith.constant 0 : i32
    %c0_i32_0 = arith.constant 0 : i32
    %c0_i32_1 = arith.constant 0 : i32
    return %c0_i32, %c0_i32_0 : i32, i32
  }
  func.func @transform_10(%arg0: i32) -> (i32, i32) {
    %c0_i32 = arith.constant 0 : i32
    %c0_i32_0 = arith.constant 0 : i32
    %c0_i32_1 = arith.constant 0 : i32
    return %c0_i32, %c0_i32_0 : i32, i32
  }
  func.func @transform_11(%arg0: i32) -> (i32, i32) {
    %c0_i32 = arith.constant 0 : i32
    %c0_i32_0 = arith.constant 0 : i32
    %c0_i32_1 = arith.constant 0 : i32
    return %c0_i32, %c0_i32_0 : i32, i32
  }
  func.func @transform_12(%arg0: i32) -> (i32, i32) {
    %c0_i32 = arith.constant 0 : i32
    %c0_i32_0 = arith.constant 0 : i32
    %c0_i32_1 = arith.constant 0 : i32
    return %c0_i32, %c0_i32_0 : i32, i32
  }
  func.func @transform_13(%arg0: i32) -> (i32, i32) {
    %c0_i32 = arith.constant 0 : i32
    %c0_i32_0 = arith.constant 0 : i32
    return %arg0, %c0_i32 : i32, i32
  }
}

</mosaic_0001>

<llo_original>
// kernel: tpu_custom_call.1
$region0: #{tpu_custom_call.1}
  #allocation0 [shape = 'u32[]', space=smem, size = 0x4, offset = 0x4, fixed_abs, tag = 'smem constant byte address 0x4 - core index']
  #allocation1 [shape = 'u32[72,128]{1,0:T(1,128)}', space=vmem, size = 0x9000, scoped, tag = 'internal scratch']
  #allocation2 [shape = 'f32[18,25,16]{2,1,0:T(8,128)}', space=vmem, size = 0x48000, scoped, tag = 'scratch operand']
  %s0 = inlined_call_operand.vmem [shape: bf16[2,256,4], index: 0, kind: input, shape index: {}]
  %s1 = inlined_call_operand.vmem [shape: bf16[4,16], index: 1, kind: input, shape index: {}]
  %s2 = inlined_call_operand.vmem [shape: f32[1,16], index: 2, kind: input, shape index: {}]
  %s3 = inlined_call_operand.vmem [shape: f32[1,16], index: 3, kind: input, shape index: {}]
  %s4 = inlined_call_operand.vmem [shape: bf16[3,3,16], index: 4, kind: input, shape index: {}]
  %s5 = inlined_call_operand.vmem [shape: f32[1,16], index: 5, kind: input, shape index: {}]
  %s6 = inlined_call_operand.vmem [shape: f32[1,16], index: 6, kind: input, shape index: {}]
  %s7 = inlined_call_operand.vmem [shape: bf16[16,8], index: 7, kind: input, shape index: {}]
  %s8 = inlined_call_operand.vmem [shape: f32[1,8], index: 8, kind: input, shape index: {}]
  %s9 = inlined_call_operand.vmem [shape: f32[1,8], index: 9, kind: input, shape index: {}]
  %s10 = inlined_call_operand.vmem [shape: bf16[4,8], index: 10, kind: input, shape index: {}]
  %s11 = inlined_call_operand.vmem [shape: f32[1,8], index: 11, kind: input, shape index: {}]
  %s12 = inlined_call_operand.vmem [shape: f32[1,8], index: 12, kind: input, shape index: {}]
  %s13 = inlined_call_operand.vmem [shape: f32[512,8], index: 13, kind: output, shape index: {}]
  %s14 = sld [smem:[#allocation0]]
  $region85: #{tpu_custom_call.1} parent=0
    _
  %s16 = ssub.s32 1, %s14
  %s17 = scalar_select 0, %s16, %s14
  loop: start=0, step=1, limit=4
  $region2: #{tpu_custom_call.1} parent=0 // loop_pre_header
    _
  $region3: #{tpu_custom_call.1} parent=0 // loop_header
    %s19 = sphi 0, %s23
    %p20 = scmp.ge.s32.totalorder %s19, 4
    %s29 = sphi 0, %s31
    %s32 = sphi 0, %s29
    %s33 = sphi 0, %s32
    %s49 = sphi 0, %s33
    %s53 = sphi 0, %s53
    %s55 = sphi 0, %s53
    %s56 = sphi 0, %s55
    %s70 = sphi 0, %s56
    %s74 = sphi 0, %s74
    %s76 = sphi 0, %s74
    %s77 = sphi 0, %s76
    %s91 = sphi 0, %s77
    %s95 = sphi 0, %s95
    %s97 = sphi 0, %s95
    %s98 = sphi 0, %s97
    %s112 = sphi 0, %s98
    %s116 = sphi 0, %s116
    %s118 = sphi 0, %s116
    %s119 = sphi 0, %s118
    %s133 = sphi 0, %s119
    %s137 = sphi 0, %s137
    %s139 = sphi 0, %s137
    %s140 = sphi 0, %s139
    %s154 = sphi 0, %s140
    %s158 = sphi 0, %s158
    %s160 = sphi 0, %s158
    %s161 = sphi 0, %s160
    %s175 = sphi 0, %s161
    %s179 = sphi 0, %s179
    %s181 = sphi 0, %s179
    %s182 = sphi 0, %s181
    %s196 = sphi 0, %s182
    %s200 = sphi 0, %s200
    %s202 = sphi 0, %s200
    %s203 = sphi 0, %s202
    %s217 = sphi 0, %s203
    %s221 = sphi 0, %s221
    %s223 = sphi 0, %s221
    %s224 = sphi 0, %s223
    %s238 = sphi 0, %s224
    %s242 = sphi 0, %s242
    %s244 = sphi 0, %s242
    %s245 = sphi 0, %s244
    %s259 = sphi 0, %s245
    %s263 = sphi 0, %s263
    %s265 = sphi 0, %s263
    %s266 = sphi 0, %s265
    %s280 = sphi 0, %s266
    %s284 = sphi 0, %s284
    %s286 = sphi 0, %s284
    %s287 = sphi 0, %s286
    %s301 = sphi 0, %s287
    %s307 = sphi 0, %s309
    %s310 = sphi 0, %s307
    %s311 = sphi 0, %s310
    %s327 = sphi 0, %s311
  $region4: #{tpu_custom_call.1} parent=0 // loop_header_branch
    %22 = sbr.rel (%p20) target = $region8
  $region5: #{tpu_custom_call.1} parent=0 // loop_body
    %s24 = ssub.s32 %s19, 1
    %s25 = ssub.s32 %s19, 2
    %s26 = sadd.s32 %s19, 1
    %s27 = ssub.s32 %s19, %s26
    %p28 = scmp.eq.s32.totalorder %s27, 0
    %s30 = sadd.s32 %s29, 1
    %s31 = scalar_select %p28, %s29, %s30
    %p34 = pneg %p28
    %p35 = scmp.eq.s32.totalorder %s19, 1
    %p36 = por %p34, %p35
    %p37 = scmp.ne.s32.totalorder %s29, %s32
    %p38 = scmp.eq.s32.totalorder %s19, 0
    %p39 = por %p37, %p38
    %p40 = scmp.ne.s32.totalorder %s29, %s32
    %p41 = scmp.eq.s32.totalorder %s24, 1
    %p42 = por %p40, %p41
    %p43 = scmp.ne.s32.totalorder %s32, %s33
    %p44 = scmp.eq.s32.totalorder %s24, 0
    %p45 = por %p43, %p44
    %p46 = scmp.ne.s32.totalorder %s32, %s33
    %p47 = scmp.eq.s32.totalorder %s25, 1
    %p48 = por %p46, %p47
    %p50 = scmp.ne.s32.totalorder %s33, %s49
    %p51 = scmp.eq.s32.totalorder %s25, 0
    %p52 = por %p50, %p51
    %s54 = sadd.s32 %s53, 1
    %p57 = scmp.eq.s32.totalorder %s19, 1
    %p58 = scmp.ne.s32.totalorder %s53, %s55
    %p59 = scmp.eq.s32.totalorder %s19, 0
    %p60 = por %p58, %p59
    %p61 = scmp.ne.s32.totalorder %s53, %s55
    %p62 = scmp.eq.s32.totalorder %s24, 1
    %p63 = por %p61, %p62
    %p64 = scmp.ne.s32.totalorder %s55, %s56
    %p65 = scmp.eq.s32.totalorder %s24, 0
    %p66 = por %p64, %p65
    %p67 = scmp.ne.s32.totalorder %s55, %s56
    %p68 = scmp.eq.s32.totalorder %s25, 1
    %p69 = por %p67, %p68
    %p71 = scmp.ne.s32.totalorder %s56, %s70
    %p72 = scmp.eq.s32.totalorder %s25, 0
    %p73 = por %p71, %p72
    %s75 = sadd.s32 %s74, 1
    %p78 = scmp.eq.s32.totalorder %s19, 1
    %p79 = scmp.ne.s32.totalorder %s74, %s76
    %p80 = scmp.eq.s32.totalorder %s19, 0
    %p81 = por %p79, %p80
    %p82 = scmp.ne.s32.totalorder %s74, %s76
    %p83 = scmp.eq.s32.totalorder %s24, 1
    %p84 = por %p82, %p83
    %p85 = scmp.ne.s32.totalorder %s76, %s77
    %p86 = scmp.eq.s32.totalorder %s24, 0
    %p87 = por %p85, %p86
    %p88 = scmp.ne.s32.totalorder %s76, %s77
    %p89 = scmp.eq.s32.totalorder %s25, 1
    %p90 = por %p88, %p89
    %p92 = scmp.ne.s32.totalorder %s77, %s91
    %p93 = scmp.eq.s32.totalorder %s25, 0
    %p94 = por %p92, %p93
    %s96 = sadd.s32 %s95, 1
    %p99 = scmp.eq.s32.totalorder %s19, 1
    %p100 = scmp.ne.s32.totalorder %s95, %s97
    %p101 = scmp.eq.s32.totalorder %s19, 0
    %p102 = por %p100, %p101
    %p103 = scmp.ne.s32.totalorder %s95, %s97
    %p104 = scmp.eq.s32.totalorder %s24, 1
    %p105 = por %p103, %p104
    %p106 = scmp.ne.s32.totalorder %s97, %s98
    %p107 = scmp.eq.s32.totalorder %s24, 0
    %p108 = por %p106, %p107
    %p109 = scmp.ne.s32.totalorder %s97, %s98
    %p110 = scmp.eq.s32.totalorder %s25, 1
    %p111 = por %p109, %p110
    %p113 = scmp.ne.s32.totalorder %s98, %s112
    %p114 = scmp.eq.s32.totalorder %s25, 0
    %p115 = por %p113, %p114
    %s117 = sadd.s32 %s116, 1
    %p120 = scmp.eq.s32.totalorder %s19, 1
    %p121 = scmp.ne.s32.totalorder %s116, %s118
    %p122 = scmp.eq.s32.totalorder %s19, 0
    %p123 = por %p121, %p122
    %p124 = scmp.ne.s32.totalorder %s116, %s118
    %p125 = scmp.eq.s32.totalorder %s24, 1
    %p126 = por %p124, %p125
    %p127 = scmp.ne.s32.totalorder %s118, %s119
    %p128 = scmp.eq.s32.totalorder %s24, 0
    %p129 = por %p127, %p128
    %p130 = scmp.ne.s32.totalorder %s118, %s119
    %p131 = scmp.eq.s32.totalorder %s25, 1
    %p132 = por %p130, %p131
    %p134 = scmp.ne.s32.totalorder %s119, %s133
    %p135 = scmp.eq.s32.totalorder %s25, 0
    %p136 = por %p134, %p135
    %s138 = sadd.s32 %s137, 1
    %p141 = scmp.eq.s32.totalorder %s19, 1
    %p142 = scmp.ne.s32.totalorder %s137, %s139
    %p143 = scmp.eq.s32.totalorder %s19, 0
    %p144 = por %p142, %p143
    %p145 = scmp.ne.s32.totalorder %s137, %s139
    %p146 = scmp.eq.s32.totalorder %s24, 1
    %p147 = por %p145, %p146
    %p148 = scmp.ne.s32.totalorder %s139, %s140
    %p149 = scmp.eq.s32.totalorder %s24, 0
    %p150 = por %p148, %p149
    %p151 = scmp.ne.s32.totalorder %s139, %s140
    %p152 = scmp.eq.s32.totalorder %s25, 1
    %p153 = por %p151, %p152
    %p155 = scmp.ne.s32.totalorder %s140, %s154
    %p156 = scmp.eq.s32.totalorder %s25, 0
    %p157 = por %p155, %p156
    %s159 = sadd.s32 %s158, 1
    %p162 = scmp.eq.s32.totalorder %s19, 1
    %p163 = scmp.ne.s32.totalorder %s158, %s160
    %p164 = scmp.eq.s32.totalorder %s19, 0
    %p165 = por %p163, %p164
    %p166 = scmp.ne.s32.totalorder %s158, %s160
    %p167 = scmp.eq.s32.totalorder %s24, 1
    %p168 = por %p166, %p167
    %p169 = scmp.ne.s32.totalorder %s160, %s161
    %p170 = scmp.eq.s32.totalorder %s24, 0
    %p171 = por %p169, %p170
    %p172 = scmp.ne.s32.totalorder %s160, %s161
    %p173 = scmp.eq.s32.totalorder %s25, 1
    %p174 = por %p172, %p173
    %p176 = scmp.ne.s32.totalorder %s161, %s175
    %p177 = scmp.eq.s32.totalorder %s25, 0
    %p178 = por %p176, %p177
    %s180 = sadd.s32 %s179, 1
    %p183 = scmp.eq.s32.totalorder %s19, 1
    %p184 = scmp.ne.s32.totalorder %s179, %s181
    %p185 = scmp.eq.s32.totalorder %s19, 0
    %p186 = por %p184, %p185
    %p187 = scmp.ne.s32.totalorder %s179, %s181
    %p188 = scmp.eq.s32.totalorder %s24, 1
    %p189 = por %p187, %p188
    %p190 = scmp.ne.s32.totalorder %s181, %s182
    %p191 = scmp.eq.s32.totalorder %s24, 0
    %p192 = por %p190, %p191
    %p193 = scmp.ne.s32.totalorder %s181, %s182
    %p194 = scmp.eq.s32.totalorder %s25, 1
    %p195 = por %p193, %p194
    %p197 = scmp.ne.s32.totalorder %s182, %s196
    %p198 = scmp.eq.s32.totalorder %s25, 0
    %p199 = por %p197, %p198
    %s201 = sadd.s32 %s200, 1
    %p204 = scmp.eq.s32.totalorder %s19, 1
    %p205 = scmp.ne.s32.totalorder %s200, %s202
    %p206 = scmp.eq.s32.totalorder %s19, 0
    %p207 = por %p205, %p206
    %p208 = scmp.ne.s32.totalorder %s200, %s202
    %p209 = scmp.eq.s32.totalorder %s24, 1
    %p210 = por %p208, %p209
    %p211 = scmp.ne.s32.totalorder %s202, %s203
    %p212 = scmp.eq.s32.totalorder %s24, 0
    %p213 = por %p211, %p212
    %p214 = scmp.ne.s32.totalorder %s202, %s203
    %p215 = scmp.eq.s32.totalorder %s25, 1
    %p216 = por %p214, %p215
    %p218 = scmp.ne.s32.totalorder %s203, %s217
    %p219 = scmp.eq.s32.totalorder %s25, 0
    %p220 = por %p218, %p219
    %s222 = sadd.s32 %s221, 1
    %p225 = scmp.eq.s32.totalorder %s19, 1
    %p226 = scmp.ne.s32.totalorder %s221, %s223
    %p227 = scmp.eq.s32.totalorder %s19, 0
    %p228 = por %p226, %p227
    %p229 = scmp.ne.s32.totalorder %s221, %s223
    %p230 = scmp.eq.s32.totalorder %s24, 1
    %p231 = por %p229, %p230
    %p232 = scmp.ne.s32.totalorder %s223, %s224
    %p233 = scmp.eq.s32.totalorder %s24, 0
    %p234 = por %p232, %p233
    %p235 = scmp.ne.s32.totalorder %s223, %s224
    %p236 = scmp.eq.s32.totalorder %s25, 1
    %p237 = por %p235, %p236
    %p239 = scmp.ne.s32.totalorder %s224, %s238
    %p240 = scmp.eq.s32.totalorder %s25, 0
    %p241 = por %p239, %p240
    %s243 = sadd.s32 %s242, 1
    %p246 = scmp.eq.s32.totalorder %s19, 1
    %p247 = scmp.ne.s32.totalorder %s242, %s244
    %p248 = scmp.eq.s32.totalorder %s19, 0
    %p249 = por %p247, %p248
    %p250 = scmp.ne.s32.totalorder %s242, %s244
    %p251 = scmp.eq.s32.totalorder %s24, 1
    %p252 = por %p250, %p251
    %p253 = scmp.ne.s32.totalorder %s244, %s245
    %p254 = scmp.eq.s32.totalorder %s24, 0
    %p255 = por %p253, %p254
    %p256 = scmp.ne.s32.totalorder %s244, %s245
    %p257 = scmp.eq.s32.totalorder %s25, 1
    %p258 = por %p256, %p257
    %p260 = scmp.ne.s32.totalorder %s245, %s259
    %p261 = scmp.eq.s32.totalorder %s25, 0
    %p262 = por %p260, %p261
    %s264 = sadd.s32 %s263, 1
    %p267 = scmp.eq.s32.totalorder %s19, 1
    %p268 = scmp.ne.s32.totalorder %s263, %s265
    %p269 = scmp.eq.s32.totalorder %s19, 0
    %p270 = por %p268, %p269
    %p271 = scmp.ne.s32.totalorder %s263, %s265
    %p272 = scmp.eq.s32.totalorder %s24, 1
    %p273 = por %p271, %p272
    %p274 = scmp.ne.s32.totalorder %s265, %s266
    %p275 = scmp.eq.s32.totalorder %s24, 0
    %p276 = por %p274, %p275
    %p277 = scmp.ne.s32.totalorder %s265, %s266
    %p278 = scmp.eq.s32.totalorder %s25, 1
    %p279 = por %p277, %p278
    %p281 = scmp.ne.s32.totalorder %s266, %s280
    %p282 = scmp.eq.s32.totalorder %s25, 0
    %p283 = por %p281, %p282
    %s285 = sadd.s32 %s284, 1
    %p288 = scmp.eq.s32.totalorder %s19, 1
    %p289 = scmp.ne.s32.totalorder %s284, %s286
    %p290 = scmp.eq.s32.totalorder %s19, 0
    %p291 = por %p289, %p290
    %p292 = scmp.ne.s32.totalorder %s284, %s286
    %p293 = scmp.eq.s32.totalorder %s24, 1
    %p294 = por %p292, %p293
    %p295 = scmp.ne.s32.totalorder %s286, %s287
    %p296 = scmp.eq.s32.totalorder %s24, 0
    %p297 = por %p295, %p296
    %p298 = scmp.ne.s32.totalorder %s286, %s287
    %p299 = scmp.eq.s32.totalorder %s25, 1
    %p300 = por %p298, %p299
    %p302 = scmp.ne.s32.totalorder %s287, %s301
    %p303 = scmp.eq.s32.totalorder %s25, 0
    %p304 = por %p302, %p303
    %s305 = ssub.s32 %s19, %s26
    %p306 = scmp.eq.s32.totalorder %s305, 0
    %s308 = sadd.s32 %s307, 1
    %s309 = scalar_select %p306, %s307, %s308
    %p312 = pneg %p306
    %p313 = scmp.eq.s32.totalorder %s19, 1
    %p314 = por %p312, %p313
    %p315 = scmp.ne.s32.totalorder %s307, %s310
    %p316 = scmp.eq.s32.totalorder %s19, 0
    %p317 = por %p315, %p316
    %p318 = scmp.ne.s32.totalorder %s307, %s310
    %p319 = scmp.eq.s32.totalorder %s24, 1
    %p320 = por %p318, %p319
    %p321 = scmp.ne.s32.totalorder %s310, %s311
    %p322 = scmp.eq.s32.totalorder %s24, 0
    %p323 = por %p321, %p322
    %p324 = scmp.ne.s32.totalorder %s310, %s311
    %p325 = scmp.eq.s32.totalorder %s25, 1
    %p326 = por %p324, %p325
    %p328 = scmp.ne.s32.totalorder %s311, %s327
    %p329 = scmp.eq.s32.totalorder %s25, 0
    %p330 = por %p328, %p329
    %p331 = scmp.le.s32.totalorder 1, %s19
    %p332 = scmp.lt.s32.totalorder %s19, 3
    %p333 = pnand %p331, %p332
    %p334 = pneg %p333
    // Predicated region
    $region9: #{tpu_custom_call.1} parent=5 // pred_check
      _
    $region10: #{tpu_custom_call.1} parent=5 // pred_check_branch
      %336 = sbr.rel (%p333) target = $region12
    $region11: #{tpu_custom_call.1} parent=5 // pred_region
      %s337 = ssub.s32 %s19, 1
      // Predicated region
      $region13: #{tpu_custom_call.1} parent=11 // pred_check
        %p338 = pneg %p66
      $region14: #{tpu_custom_call.1} parent=11 // pred_check_branch
        %340 = sbr.rel (%p338) target = $region16
      $region15: #{tpu_custom_call.1} parent=11 // pred_region
        _
      $region16: #{tpu_custom_call.1} parent=11 // pred_fallthru
        _
      // Predicated region
      $region17: #{tpu_custom_call.1} parent=11 // pred_check
        %p341 = pneg %p87
      $region18: #{tpu_custom_call.1} parent=11 // pred_check_branch
        %343 = sbr.rel (%p341) target = $region20
      $region19: #{tpu_custom_call.1} parent=11 // pred_region
        _
      $region20: #{tpu_custom_call.1} parent=11 // pred_fallthru
        _
      // Predicated region
      $region21: #{tpu_custom_call.1} parent=11 // pred_check
        %p344 = pneg %p108
      $region22: #{tpu_custom_call.1} parent=11 // pred_check_branch
        %346 = sbr.rel (%p344) target = $region24
      $region23: #{tpu_custom_call.1} parent=11 // pred_region
        _
      $region24: #{tpu_custom_call.1} parent=11 // pred_fallthru
        _
      // Predicated region
      $region25: #{tpu_custom_call.1} parent=11 // pred_check
        %p347 = pneg %p129
      $region26: #{tpu_custom_call.1} parent=11 // pred_check_branch
        %349 = sbr.rel (%p347) target = $region28
      $region27: #{tpu_custom_call.1} parent=11 // pred_region
        _
      $region28: #{tpu_custom_call.1} parent=11 // pred_fallthru
        _
      // Predicated region
      $region29: #{tpu_custom_call.1} parent=11 // pred_check
        %p350 = pneg %p150
      $region30: #{tpu_custom_call.1} parent=11 // pred_check_branch
        %352 = sbr.rel (%p350) target = $region32
      $region31: #{tpu_custom_call.1} parent=11 // pred_region
        _
      $region32: #{tpu_custom_call.1} parent=11 // pred_fallthru
        _
      // Predicated region
      $region33: #{tpu_custom_call.1} parent=11 // pred_check
        %p353 = pneg %p171
      $region34: #{tpu_custom_call.1} parent=11 // pred_check_branch
        %355 = sbr.rel (%p353) target = $region36
      $region35: #{tpu_custom_call.1} parent=11 // pred_region
        _
      $region36: #{tpu_custom_call.1} parent=11 // pred_fallthru
        _
      // Predicated region
      $region37: #{tpu_custom_call.1} parent=11 // pred_check
        %p356 = pneg %p192
      $region38: #{tpu_custom_call.1} parent=11 // pred_check_branch
        %358 = sbr.rel (%p356) target = $region40
      $region39: #{tpu_custom_call.1} parent=11 // pred_region
        _
      $region40: #{tpu_custom_call.1} parent=11 // pred_fallthru
        _
      // Predicated region
      $region41: #{tpu_custom_call.1} parent=11 // pred_check
        %p359 = pneg %p213
      $region42: #{tpu_custom_call.1} parent=11 // pred_check_branch
        %361 = sbr.rel (%p359) target = $region44
      $region43: #{tpu_custom_call.1} parent=11 // pred_region
        _
      $region44: #{tpu_custom_call.1} parent=11 // pred_fallthru
        _
      // Predicated region
      $region45: #{tpu_custom_call.1} parent=11 // pred_check
        %p362 = pneg %p234
      $region46: #{tpu_custom_call.1} parent=11 // pred_check_branch
        %364 = sbr.rel (%p362) target = $region48
      $region47: #{tpu_custom_call.1} parent=11 // pred_region
        _
      $region48: #{tpu_custom_call.1} parent=11 // pred_fallthru
        _
      // Predicated region
      $region49: #{tpu_custom_call.1} parent=11 // pred_check
        %p365 = pneg %p255
      $region50: #{tpu_custom_call.1} parent=11 // pred_check_branch
        %367 = sbr.rel (%p365) target = $region52
      $region51: #{tpu_custom_call.1} parent=11 // pred_region
        _
      $region52: #{tpu_custom_call.1} parent=11 // pred_fallthru
        _
      // Predicated region
      $region53: #{tpu_custom_call.1} parent=11 // pred_check
        %p368 = pneg %p276
      $region54: #{tpu_custom_call.1} parent=11 // pred_check_branch
        %370 = sbr.rel (%p368) target = $region56
      $region55: #{tpu_custom_call.1} parent=11 // pred_region
        _
      $region56: #{tpu_custom_call.1} parent=11 // pred_fallthru
        _
      // Predicated region
      $region57: #{tpu_custom_call.1} parent=11 // pred_check
        %p371 = pneg %p297
      $region58: #{tpu_custom_call.1} parent=11 // pred_check_branch
        %373 = sbr.rel (%p371) target = $region60
      $region59: #{tpu_custom_call.1} parent=11 // pred_region
        _
      $region60: #{tpu_custom_call.1} parent=11 // pred_fallthru
        _
    $region12: #{tpu_custom_call.1} parent=5 // pred_fallthru
      _
    %p374 = scmp.lt.s32.totalorder %s19, 2
    // Predicated region
    $region61: #{tpu_custom_call.1} parent=5 // pred_check
      %p375 = pneg %p374
    $region62: #{tpu_custom_call.1} parent=5 // pred_check_branch
      %377 = sbr.rel (%p375) target = $region64
    $region63: #{tpu_custom_call.1} parent=5 // pred_region
      // Predicated region
      $region65: #{tpu_custom_call.1} parent=63 // pred_check
        %p378 = pneg %p39
      $region66: #{tpu_custom_call.1} parent=63 // pred_check_branch
        %380 = sbr.rel (%p378) target = $region68
      $region67: #{tpu_custom_call.1} parent=63 // pred_region
        %p381 = scmp.lt.s32.totalorder %s19, 1
        %s382 = scalar_select %p381, %s19, 1
        %s383 = smul.addr %s382, 32
        %s384 = smul.addr %s383, 4
        %s385 = scalar_lea.vmem %s0, %s384
      $region68: #{tpu_custom_call.1} parent=63 // pred_fallthru
        _
    $region64: #{tpu_custom_call.1} parent=5 // pred_fallthru
      _
    %p386 = scmp.le.s32.totalorder 1, %s19
    %p387 = scmp.lt.s32.totalorder %s19, 3
    %p388 = pnand %p386, %p387
    %p389 = pneg %p388
    // Predicated region
    $region69: #{tpu_custom_call.1} parent=5 // pred_check
      _
    $region70: #{tpu_custom_call.1} parent=5 // pred_check_branch
      %391 = sbr.rel (%p388) target = $region72
    $region71: #{tpu_custom_call.1} parent=5 // pred_region
      %s392 = ssub.s32 %s19, 1
      %p393 = scmp.lt.s32.totalorder %s24, 1
      %s394 = scalar_select %p393, %s24, 1
      %s395 = smul.addr %s394, 32
      %s396 = smul.addr %s395, 4
      %s397 = scalar_lea.vmem %s0, %s396
      %p398 = pneg %p45
      %p399 = pneg %p42
      %p400 = pneg %p66
      %p401 = pneg %p63
      %p402 = pneg %p87
      %p403 = pneg %p84
      %p404 = pneg %p108
      %p405 = pneg %p105
      %p406 = pneg %p129
      %p407 = pneg %p126
      %p408 = pneg %p150
      %p409 = pneg %p147
      %p410 = pneg %p171
      %p411 = pneg %p168
      %p412 = pneg %p192
      %p413 = pneg %p189
      %p414 = pneg %p213
      %p415 = pneg %p210
      %p416 = pneg %p234
      %p417 = pneg %p231
      %p418 = pneg %p255
      %p419 = pneg %p252
      %p420 = pneg %p276
      %p421 = pneg %p273
      %p422 = pneg %p297
      %p423 = pneg %p294
      %p424 = pneg %p323
      %p425 = pneg %p320
      %s426 = smul.u32 32, %s24
      %p427 = scmp.lt.s32.totalorder %s426, 63
      %s428 = scalar_select %p427, %s426, 63
      %s429 = smul.addr %s428, 8
      %s430 = scalar_lea.vmem %s13, %s429
      %p431 = scmp.lt.s32.totalorder %s24, 1
      %s432 = scalar_select %p431, %s24, 1
      %s433 = smul.addr %s432, 32
      %s434 = smul.addr %s433, 4
      %s435 = scalar_lea.vmem %s0, %s434
      %s436 = smul.u32 32, %s24
      %p437 = scmp.lt.s32.totalorder %s436, 63
      %s438 = scalar_select %p437, %s436, 63
      %s439 = smul.addr %s438, 8
      %s440 = scalar_lea.vmem %s13, %s439
      %s441 = smul.u32 32, %s24
      %v443 = vld [vmem:[%s435] sm:$0xf]
      %v444 = vld [vmem:[%s435 + $0x4] sm:$0xf]
      %v445 = vld [vmem:[%s435 + $0x8] sm:$0xf]
      %v446 = vld [vmem:[%s435 + $0xc] sm:$0xf]
      %v447 = vld [vmem:[%s435 + $0x10] sm:$0xf]
      %v448 = vld [vmem:[%s435 + $0x14] sm:$0xf]
      %v449 = vld [vmem:[%s435 + $0x18] sm:$0xf]
      %v450 = vld [vmem:[%s435 + $0x1c] sm:$0xf]
      %v451 = vld [vmem:[%s435 + $0x20] sm:$0xf]
      %v452 = vld [vmem:[%s435 + $0x24] sm:$0xf]
      %v453 = vld [vmem:[%s435 + $0x28] sm:$0xf]
      %v454 = vld [vmem:[%s435 + $0x2c] sm:$0xf]
      %v455 = vld [vmem:[%s435 + $0x30] sm:$0xf]
      %v456 = vld [vmem:[%s435 + $0x34] sm:$0xf]
      %v457 = vld [vmem:[%s435 + $0x38] sm:$0xf]
      %v458 = vld [vmem:[%s435 + $0x3c] sm:$0xf]
      %v459 = vld [vmem:[%s435 + $0x40] sm:$0xf]
      %v460 = vld [vmem:[%s435 + $0x44] sm:$0xf]
      %v461 = vld [vmem:[%s435 + $0x48] sm:$0xf]
      %v462 = vld [vmem:[%s435 + $0x4c] sm:$0xf]
      %v463 = vld [vmem:[%s435 + $0x50] sm:$0xf]
      %v464 = vld [vmem:[%s435 + $0x54] sm:$0xf]
      %v465 = vld [vmem:[%s435 + $0x58] sm:$0xf]
      %v466 = vld [vmem:[%s435 + $0x5c] sm:$0xf]
      %v467 = vld [vmem:[%s435 + $0x60] sm:$0xf]
      %v468 = vld [vmem:[%s435 + $0x64] sm:$0xf]
      %v469 = vld [vmem:[%s435 + $0x68] sm:$0xf]
      %v470 = vld [vmem:[%s435 + $0x6c] sm:$0xf]
      %v471 = vld [vmem:[%s435 + $0x70] sm:$0xf]
      %v472 = vld [vmem:[%s435 + $0x74] sm:$0xf]
      %v473 = vld [vmem:[%s435 + $0x78] sm:$0xf]
      %v474 = vld [vmem:[%s435 + $0x7c] sm:$0xf]
      %v475 = vld [vmem:[%s1] sm:$0x3]
      %v508 = vunpack.c.l.b16 %v443
      %v509 = vunpack.c.l.b16 %v444
      %v510 = vunpack.c.l.b16 %v445
      %v511 = vunpack.c.l.b16 %v446
      %v512 = vunpack.c.l.b16 %v447
      %v513 = vunpack.c.l.b16 %v448
      %v514 = vunpack.c.l.b16 %v449
      %v515 = vunpack.c.l.b16 %v450
      %v516 = vunpack.c.l.b16 %v451
      %v517 = vunpack.c.l.b16 %v452
      %v518 = vunpack.c.l.b16 %v453
      %v519 = vunpack.c.l.b16 %v454
      %v520 = vunpack.c.l.b16 %v455
      %v521 = vunpack.c.l.b16 %v456
      %v522 = vunpack.c.l.b16 %v457
      %v523 = vunpack.c.l.b16 %v458
      %v524 = vunpack.c.l.b16 %v459
      %v525 = vunpack.c.l.b16 %v460
      %v526 = vunpack.c.l.b16 %v461
      %v527 = vunpack.c.l.b16 %v462
      %v528 = vunpack.c.l.b16 %v463
      %v529 = vunpack.c.l.b16 %v464
      %v530 = vunpack.c.l.b16 %v465
      %v531 = vunpack.c.l.b16 %v466
      %v532 = vunpack.c.l.b16 %v467
      %v533 = vunpack.c.l.b16 %v468
      %v534 = vunpack.c.l.b16 %v469
      %v535 = vunpack.c.l.b16 %v470
      %v536 = vunpack.c.l.b16 %v471
      %v537 = vunpack.c.l.b16 %v472
      %v538 = vunpack.c.l.b16 %v473
      %v539 = vunpack.c.l.b16 %v474
      %v540 = vpack.c.b16 %v509, %v508
      %v541 = vpack.c.b16 %v511, %v510
      %v542 = vpack.c.b16 %v513, %v512
      %v543 = vpack.c.b16 %v515, %v514
      %v544 = vpack.c.b16 %v517, %v516
      %v545 = vpack.c.b16 %v519, %v518
      %v546 = vpack.c.b16 %v521, %v520
      %v547 = vpack.c.b16 %v523, %v522
      %v548 = vpack.c.b16 %v525, %v524
      %v549 = vpack.c.b16 %v527, %v526
      %v550 = vpack.c.b16 %v529, %v528
      %v551 = vpack.c.b16 %v531, %v530
      %v552 = vpack.c.b16 %v533, %v532
      %v553 = vpack.c.b16 %v535, %v534
      %v554 = vpack.c.b16 %v537, %v536
      %v555 = vpack.c.b16 %v539, %v538
      %vm556 = vcmask 31744
      %v558 = vsel %vm556, %v540, 0
      %v561 = vsel %vm556, %v541, 0
      %v564 = vsel %vm556, %v542, 0
      %v567 = vsel %vm556, %v543, 0
      %v570 = vsel %vm556, %v544, 0
      %v573 = vsel %vm556, %v545, 0
      %v576 = vsel %vm556, %v546, 0
      %v579 = vsel %vm556, %v547, 0
      %v582 = vsel %vm556, %v548, 0
      %v585 = vsel %vm556, %v549, 0
      %v588 = vsel %vm556, %v550, 0
      %v591 = vsel %vm556, %v551, 0
      %v594 = vsel %vm556, %v552, 0
      %v597 = vsel %vm556, %v553, 0
      %v600 = vsel %vm556, %v554, 0
      %v603 = vsel %vm556, %v555, 0
      %vm605 = vcmask 1041408
      %v607 = vsel %vm605, %v475, 0
      %609 = vmatpush.bf16.msra.mxu0 0
      %610 = vmatpush.bf16.msra.mxu0 0
      %611 = vmatpush.bf16.msra.mxu0 0
      %612 = vmatpush.bf16.msra.mxu0 0
      %613 = vmatpush.bf16.msra.mxu0 0
      %614 = vmatpush.bf16.msra.mxu0 0
      %615 = vmatpush.bf16.msra.mxu0 0
      %616 = vmatpush.bf16.msra.mxu0 %v607
      %617 = vmatmul.bf16.gmra.mxu0 %v558
      %v618 = vpop.f32.mrf.mxu0
      %v619 = vadd.f32 0.0, %v618
      %v620 = vpop.f32.mrf.mxu0
      %v621 = vadd.f32 0.0, %v620
      %622 = vmatmul.bf16.gmra.mxu0 %v561
      %v623 = vpop.f32.mrf.mxu0
      %v624 = vadd.f32 0.0, %v623
      %v625 = vpop.f32.mrf.mxu0
      %v626 = vadd.f32 0.0, %v625
      %627 = vmatmul.bf16.gmra.mxu0 %v564
      %v628 = vpop.f32.mrf.mxu0
      %v629 = vadd.f32 0.0, %v628
      %v630 = vpop.f32.mrf.mxu0
      %v631 = vadd.f32 0.0, %v630
      %632 = vmatmul.bf16.gmra.mxu0 %v567
      %v633 = vpop.f32.mrf.mxu0
      %v634 = vadd.f32 0.0, %v633
      %v635 = vpop.f32.mrf.mxu0
      %v636 = vadd.f32 0.0, %v635
      %637 = vmatmul.bf16.gmra.mxu0 %v570
      %v638 = vpop.f32.mrf.mxu0
      %v639 = vadd.f32 0.0, %v638
      %v640 = vpop.f32.mrf.mxu0
      %v641 = vadd.f32 0.0, %v640
      %642 = vmatmul.bf16.gmra.mxu0 %v573
      %v643 = vpop.f32.mrf.mxu0
      %v644 = vadd.f32 0.0, %v643
      %v645 = vpop.f32.mrf.mxu0
      %v646 = vadd.f32 0.0, %v645
      %647 = vmatmul.bf16.gmra.mxu0 %v576
      %v648 = vpop.f32.mrf.mxu0
      %v649 = vadd.f32 0.0, %v648
      %v650 = vpop.f32.mrf.mxu0
      %v651 = vadd.f32 0.0, %v650
      %652 = vmatmul.bf16.gmra.mxu0 %v579
      %v653 = vpop.f32.mrf.mxu0
      %v654 = vadd.f32 0.0, %v653
      %v655 = vpop.f32.mrf.mxu0
      %v656 = vadd.f32 0.0, %v655
      %657 = vmatmul.bf16.gmra.mxu0 %v582
      %v658 = vpop.f32.mrf.mxu0
      %v659 = vadd.f32 0.0, %v658
      %v660 = vpop.f32.mrf.mxu0
      %v661 = vadd.f32 0.0, %v660
      %662 = vmatmul.bf16.gmra.mxu0 %v585
      %v663 = vpop.f32.mrf.mxu0
      %v664 = vadd.f32 0.0, %v663
      %v665 = vpop.f32.mrf.mxu0
      %v666 = vadd.f32 0.0, %v665
      %667 = vmatmul.bf16.gmra.mxu0 %v588
      %v668 = vpop.f32.mrf.mxu0
      %v669 = vadd.f32 0.0, %v668
      %v670 = vpop.f32.mrf.mxu0
      %v671 = vadd.f32 0.0, %v670
      %672 = vmatmul.bf16.gmra.mxu0 %v591
      %v673 = vpop.f32.mrf.mxu0
      %v674 = vadd.f32 0.0, %v673
      %v675 = vpop.f32.mrf.mxu0
      %v676 = vadd.f32 0.0, %v675
      %677 = vmatmul.bf16.gmra.mxu0 %v594
      %v678 = vpop.f32.mrf.mxu0
      %v679 = vadd.f32 0.0, %v678
      %v680 = vpop.f32.mrf.mxu0
      %v681 = vadd.f32 0.0, %v680
      %682 = vmatmul.bf16.gmra.mxu0 %v597
      %v683 = vpop.f32.mrf.mxu0
      %v684 = vadd.f32 0.0, %v683
      %v685 = vpop.f32.mrf.mxu0
      %v686 = vadd.f32 0.0, %v685
      %687 = vmatmul.bf16.gmra.mxu0 %v600
      %v688 = vpop.f32.mrf.mxu0
      %v689 = vadd.f32 0.0, %v688
      %v690 = vpop.f32.mrf.mxu0
      %v691 = vadd.f32 0.0, %v690
      %692 = vmatmul.bf16.gmra.mxu0 %v603
      %v693 = vpop.f32.mrf.mxu0
      %v694 = vadd.f32 0.0, %v693
      %v695 = vpop.f32.mrf.mxu0
      %v696 = vadd.f32 0.0, %v695
      %697 = vdwg.mxu0
      %v698 = vld [vmem:[%s2] sm:$0x1]
      %v700 = vperm.slane %v698, 0
      %v702 = vmul.f32 %v619, %v700
      %v703 = vmul.f32 %v621, %v700
      %v704 = vmul.f32 %v624, %v700
      %v705 = vmul.f32 %v626, %v700
      %v706 = vmul.f32 %v629, %v700
      %v707 = vmul.f32 %v631, %v700
      %v708 = vmul.f32 %v634, %v700
      %v709 = vmul.f32 %v636, %v700
      %v710 = vmul.f32 %v639, %v700
      %v711 = vmul.f32 %v641, %v700
      %v712 = vmul.f32 %v644, %v700
      %v713 = vmul.f32 %v646, %v700
      %v714 = vmul.f32 %v649, %v700
      %v715 = vmul.f32 %v651, %v700
      %v716 = vmul.f32 %v654, %v700
      %v717 = vmul.f32 %v656, %v700
      %v718 = vmul.f32 %v659, %v700
      %v719 = vmul.f32 %v661, %v700
      %v720 = vmul.f32 %v664, %v700
      %v721 = vmul.f32 %v666, %v700
      %v722 = vmul.f32 %v669, %v700
      %v723 = vmul.f32 %v671, %v700
      %v724 = vmul.f32 %v674, %v700
      %v725 = vmul.f32 %v676, %v700
      %v726 = vmul.f32 %v679, %v700
      %v727 = vmul.f32 %v681, %v700
      %v728 = vmul.f32 %v684, %v700
      %v729 = vmul.f32 %v686, %v700
      %v730 = vmul.f32 %v689, %v700
      %v731 = vmul.f32 %v691, %v700
      %v732 = vmul.f32 %v694, %v700
      %v733 = vmul.f32 %v696, %v700
      %v734 = vld [vmem:[%s3] sm:$0x1]
      %v736 = vperm.slane %v734, 0
      %v738 = vadd.f32 %v702, %v736
      %v739 = vadd.f32 %v703, %v736
      %v740 = vadd.f32 %v704, %v736
      %v741 = vadd.f32 %v705, %v736
      %v742 = vadd.f32 %v706, %v736
      %v743 = vadd.f32 %v707, %v736
      %v744 = vadd.f32 %v708, %v736
      %v745 = vadd.f32 %v709, %v736
      %v746 = vadd.f32 %v710, %v736
      %v747 = vadd.f32 %v711, %v736
      %v748 = vadd.f32 %v712, %v736
      %v749 = vadd.f32 %v713, %v736
      %v750 = vadd.f32 %v714, %v736
      %v751 = vadd.f32 %v715, %v736
      %v752 = vadd.f32 %v716, %v736
      %v753 = vadd.f32 %v717, %v736
      %v754 = vadd.f32 %v718, %v736
      %v755 = vadd.f32 %v719, %v736
      %v756 = vadd.f32 %v720, %v736
      %v757 = vadd.f32 %v721, %v736
      %v758 = vadd.f32 %v722, %v736
      %v759 = vadd.f32 %v723, %v736
      %v760 = vadd.f32 %v724, %v736
      %v761 = vadd.f32 %v725, %v736
      %v762 = vadd.f32 %v726, %v736
      %v763 = vadd.f32 %v727, %v736
      %v764 = vadd.f32 %v728, %v736
      %v765 = vadd.f32 %v729, %v736
      %v766 = vadd.f32 %v730, %v736
      %v767 = vadd.f32 %v731, %v736
      %v768 = vadd.f32 %v732, %v736
      %v769 = vadd.f32 %v733, %v736
      %v770 = vmax.f32 %v738, 0.0
      %v771 = vmax.f32 %v739, 0.0
      %v772 = vmax.f32 %v740, 0.0
      %v773 = vmax.f32 %v741, 0.0
      %v774 = vmax.f32 %v742, 0.0
      %v775 = vmax.f32 %v743, 0.0
      %v776 = vmax.f32 %v744, 0.0
      %v777 = vmax.f32 %v745, 0.0
      %v778 = vmax.f32 %v746, 0.0
      %v779 = vmax.f32 %v747, 0.0
      %v780 = vmax.f32 %v748, 0.0
      %v781 = vmax.f32 %v749, 0.0
      %v782 = vmax.f32 %v750, 0.0
      %v783 = vmax.f32 %v751, 0.0
      %v784 = vmax.f32 %v752, 0.0
      %v785 = vmax.f32 %v753, 0.0
      %v786 = vmax.f32 %v754, 0.0
      %v787 = vmax.f32 %v755, 0.0
      %v788 = vmax.f32 %v756, 0.0
      %v789 = vmax.f32 %v757, 0.0
      %v790 = vmax.f32 %v758, 0.0
      %v791 = vmax.f32 %v759, 0.0
      %v792 = vmax.f32 %v760, 0.0
      %v793 = vmax.f32 %v761, 0.0
      %v794 = vmax.f32 %v762, 0.0
      %v795 = vmax.f32 %v763, 0.0
      %v796 = vmax.f32 %v764, 0.0
      %v797 = vmax.f32 %v765, 0.0
      %v798 = vmax.f32 %v766, 0.0
      %v799 = vmax.f32 %v767, 0.0
      %v800 = vmax.f32 %v768, 0.0
      %v801 = vmax.f32 %v769, 0.0
      %vm802 = vcmask 130048
      %803 = vst.msk [vmem:[#allocation2] sm:$0xff] %vm802, 0.0
      %804 = vst.msk [vmem:[#allocation2 + $0x8] sm:$0xff] %vm802, 0.0
      %805 = vst.msk [vmem:[#allocation2 + $0x10] sm:$0xff] %vm802, 0.0
      %vm806 = vcmask 122880
      %807 = vst.msk [vmem:[#allocation2 + $0x18] sm:$0x1] %vm806, 0.0
      %808 = vst.msk [vmem:[#allocation2 + $0x20] sm:$0xff] %vm802, 0.0
      %809 = vst.msk [vmem:[#allocation2 + $0x28] sm:$0xff] %vm802, 0.0
      %810 = vst.msk [vmem:[#allocation2 + $0x30] sm:$0xff] %vm802, 0.0
      %811 = vst.msk [vmem:[#allocation2 + $0x38] sm:$0x1] %vm806, 0.0
      %812 = vst.msk [vmem:[#allocation2 + $0x40] sm:$0xff] %vm802, 0.0
      %813 = vst.msk [vmem:[#allocation2 + $0x48] sm:$0xff] %vm802, 0.0
      %814 = vst.msk [vmem:[#allocation2 + $0x50] sm:$0xff] %vm802, 0.0
      %815 = vst.msk [vmem:[#allocation2 + $0x58] sm:$0x1] %vm806, 0.0
      %816 = vst.msk [vmem:[#allocation2 + $0x60] sm:$0xff] %vm802, 0.0
      %817 = vst.msk [vmem:[#allocation2 + $0x68] sm:$0xff] %vm802, 0.0
      %818 = vst.msk [vmem:[#allocation2 + $0x70] sm:$0xff] %vm802, 0.0
      %819 = vst.msk [vmem:[#allocation2 + $0x78] sm:$0x1] %vm806, 0.0
      %820 = vst.msk [vmem:[#allocation2 + $0x80] sm:$0xff] %vm802, 0.0
      %821 = vst.msk [vmem:[#allocation2 + $0x88] sm:$0xff] %vm802, 0.0
      %822 = vst.msk [vmem:[#allocation2 + $0x90] sm:$0xff] %vm802, 0.0
      %823 = vst.msk [vmem:[#allocation2 + $0x98] sm:$0x1] %vm806, 0.0
      %824 = vst.msk [vmem:[#allocation2 + $0xa0] sm:$0xff] %vm802, 0.0
      %825 = vst.msk [vmem:[#allocation2 + $0xa8] sm:$0xff] %vm802, 0.0
      %826 = vst.msk [vmem:[#allocation2 + $0xb0] sm:$0xff] %vm802, 0.0
      %827 = vst.msk [vmem:[#allocation2 + $0xb8] sm:$0x1] %vm806, 0.0
      %828 = vst.msk [vmem:[#allocation2 + $0xc0] sm:$0xff] %vm802, 0.0
      %829 = vst.msk [vmem:[#allocation2 + $0xc8] sm:$0xff] %vm802, 0.0
      %830 = vst.msk [vmem:[#allocation2 + $0xd0] sm:$0xff] %vm802, 0.0
      %831 = vst.msk [vmem:[#allocation2 + $0xd8] sm:$0x1] %vm806, 0.0
      %832 = vst.msk [vmem:[#allocation2 + $0xe0] sm:$0xff] %vm802, 0.0
      %833 = vst.msk [vmem:[#allocation2 + $0xe8] sm:$0xff] %vm802, 0.0
      %834 = vst.msk [vmem:[#allocation2 + $0xf0] sm:$0xff] %vm802, 0.0
      %835 = vst.msk [vmem:[#allocation2 + $0xf8] sm:$0x1] %vm806, 0.0
      %836 = vst.msk [vmem:[#allocation2 + $0x100] sm:$0xff] %vm802, 0.0
      %837 = vst.msk [vmem:[#allocation2 + $0x108] sm:$0xff] %vm802, 0.0
      %838 = vst.msk [vmem:[#allocation2 + $0x110] sm:$0xff] %vm802, 0.0
      %839 = vst.msk [vmem:[#allocation2 + $0x118] sm:$0x1] %vm806, 0.0
      %840 = vst.msk [vmem:[#allocation2 + $0x120] sm:$0xff] %vm802, 0.0
      %841 = vst.msk [vmem:[#allocation2 + $0x128] sm:$0xff] %vm802, 0.0
      %842 = vst.msk [vmem:[#allocation2 + $0x130] sm:$0xff] %vm802, 0.0
      %843 = vst.msk [vmem:[#allocation2 + $0x138] sm:$0x1] %vm806, 0.0
      %844 = vst.msk [vmem:[#allocation2 + $0x140] sm:$0xff] %vm802, 0.0
      %845 = vst.msk [vmem:[#allocation2 + $0x148] sm:$0xff] %vm802, 0.0
      %846 = vst.msk [vmem:[#allocation2 + $0x150] sm:$0xff] %vm802, 0.0
      %847 = vst.msk [vmem:[#allocation2 + $0x158] sm:$0x1] %vm806, 0.0
      %848 = vst.msk [vmem:[#allocation2 + $0x160] sm:$0xff] %vm802, 0.0
      %849 = vst.msk [vmem:[#allocation2 + $0x168] sm:$0xff] %vm802, 0.0
      %850 = vst.msk [vmem:[#allocation2 + $0x170] sm:$0xff] %vm802, 0.0
      %851 = vst.msk [vmem:[#allocation2 + $0x178] sm:$0x1] %vm806, 0.0
      %852 = vst.msk [vmem:[#allocation2 + $0x180] sm:$0xff] %vm802, 0.0
      %853 = vst.msk [vmem:[#allocation2 + $0x188] sm:$0xff] %vm802, 0.0
      %854 = vst.msk [vmem:[#allocation2 + $0x190] sm:$0xff] %vm802, 0.0
      %855 = vst.msk [vmem:[#allocation2 + $0x198] sm:$0x1] %vm806, 0.0
      %856 = vst.msk [vmem:[#allocation2 + $0x1a0] sm:$0xff] %vm802, 0.0
      %857 = vst.msk [vmem:[#allocation2 + $0x1a8] sm:$0xff] %vm802, 0.0
      %858 = vst.msk [vmem:[#allocation2 + $0x1b0] sm:$0xff] %vm802, 0.0
      %859 = vst.msk [vmem:[#allocation2 + $0x1b8] sm:$0x1] %vm806, 0.0
      %860 = vst.msk [vmem:[#allocation2 + $0x1c0] sm:$0xff] %vm802, 0.0
      %861 = vst.msk [vmem:[#allocation2 + $0x1c8] sm:$0xff] %vm802, 0.0
      %862 = vst.msk [vmem:[#allocation2 + $0x1d0] sm:$0xff] %vm802, 0.0
      %863 = vst.msk [vmem:[#allocation2 + $0x1d8] sm:$0x1] %vm806, 0.0
      %864 = vst.msk [vmem:[#allocation2 + $0x1e0] sm:$0xff] %vm802, 0.0
      %865 = vst.msk [vmem:[#allocation2 + $0x1e8] sm:$0xff] %vm802, 0.0
      %866 = vst.msk [vmem:[#allocation2 + $0x1f0] sm:$0xff] %vm802, 0.0
      %867 = vst.msk [vmem:[#allocation2 + $0x1f8] sm:$0x1] %vm806, 0.0
      %868 = vst.msk [vmem:[#allocation2 + $0x200] sm:$0xff] %vm802, 0.0
      %869 = vst.msk [vmem:[#allocation2 + $0x208] sm:$0xff] %vm802, 0.0
      %870 = vst.msk [vmem:[#allocation2 + $0x210] sm:$0xff] %vm802, 0.0
      %871 = vst.msk [vmem:[#allocation2 + $0x218] sm:$0x1] %vm806, 0.0
      %872 = vst.msk [vmem:[#allocation2 + $0x220] sm:$0xff] %vm802, 0.0
      %873 = vst.msk [vmem:[#allocation2 + $0x228] sm:$0xff] %vm802, 0.0
      %874 = vst.msk [vmem:[#allocation2 + $0x230] sm:$0xff] %vm802, 0.0
      %875 = vst.msk [vmem:[#allocation2 + $0x238] sm:$0x1] %vm806, 0.0
      %s876 = scalar_lea.vmem [#allocation2], 32
      %877 = vst.msk [vmem:[%s876 + $0x8] sm:$0xff] %vm802, %v770
      %878 = vst.msk [vmem:[%s876 + $0x10] sm:$0xff] %vm802, %v771
      %879 = vst.msk [vmem:[%s876 + $0x28] sm:$0xff] %vm802, %v772
      %880 = vst.msk [vmem:[%s876 + $0x30] sm:$0xff] %vm802, %v773
      %881 = vst.msk [vmem:[%s876 + $0x48] sm:$0xff] %vm802, %v774
      %882 = vst.msk [vmem:[%s876 + $0x50] sm:$0xff] %vm802, %v775
      %883 = vst.msk [vmem:[%s876 + $0x68] sm:$0xff] %vm802, %v776
      %884 = vst.msk [vmem:[%s876 + $0x70] sm:$0xff] %vm802, %v777
      %885 = vst.msk [vmem:[%s876 + $0x88] sm:$0xff] %vm802, %v778
      %886 = vst.msk [vmem:[%s876 + $0x90] sm:$0xff] %vm802, %v779
      %887 = vst.msk [vmem:[%s876 + $0xa8] sm:$0xff] %vm802, %v780
      %888 = vst.msk [vmem:[%s876 + $0xb0] sm:$0xff] %vm802, %v781
      %889 = vst.msk [vmem:[%s876 + $0xc8] sm:$0xff] %vm802, %v782
      %890 = vst.msk [vmem:[%s876 + $0xd0] sm:$0xff] %vm802, %v783
      %891 = vst.msk [vmem:[%s876 + $0xe8] sm:$0xff] %vm802, %v784
      %892 = vst.msk [vmem:[%s876 + $0xf0] sm:$0xff] %vm802, %v785
      %893 = vst.msk [vmem:[%s876 + $0x108] sm:$0xff] %vm802, %v786
      %894 = vst.msk [vmem:[%s876 + $0x110] sm:$0xff] %vm802, %v787
      %895 = vst.msk [vmem:[%s876 + $0x128] sm:$0xff] %vm802, %v788
      %896 = vst.msk [vmem:[%s876 + $0x130] sm:$0xff] %vm802, %v789
      %897 = vst.msk [vmem:[%s876 + $0x148] sm:$0xff] %vm802, %v790
      %898 = vst.msk [vmem:[%s876 + $0x150] sm:$0xff] %vm802, %v791
      %899 = vst.msk [vmem:[%s876 + $0x168] sm:$0xff] %vm802, %v792
      %900 = vst.msk [vmem:[%s876 + $0x170] sm:$0xff] %vm802, %v793
      %901 = vst.msk [vmem:[%s876 + $0x188] sm:$0xff] %vm802, %v794
      %902 = vst.msk [vmem:[%s876 + $0x190] sm:$0xff] %vm802, %v795
      %903 = vst.msk [vmem:[%s876 + $0x1a8] sm:$0xff] %vm802, %v796
      %904 = vst.msk [vmem:[%s876 + $0x1b0] sm:$0xff] %vm802, %v797
      %905 = vst.msk [vmem:[%s876 + $0x1c8] sm:$0xff] %vm802, %v798
      %906 = vst.msk [vmem:[%s876 + $0x1d0] sm:$0xff] %vm802, %v799
      %907 = vst.msk [vmem:[%s876 + $0x1e8] sm:$0xff] %vm802, %v800
      %908 = vst.msk [vmem:[%s876 + $0x1f0] sm:$0xff] %vm802, %v801
      %v909 = vld [vmem:[#allocation2] sm:$0xff]
      %v910 = vld [vmem:[#allocation2 + $0x8] sm:$0xff]
      %v911 = vld [vmem:[#allocation2 + $0x10] sm:$0xff]
      %v912 = vld [vmem:[#allocation2 + $0x18] sm:$0x1]
      %v913 = vld [vmem:[#allocation2 + $0x20] sm:$0xff]
      %v914 = vld [vmem:[#allocation2 + $0x28] sm:$0xff]
      %v915 = vld [vmem:[#allocation2 + $0x30] sm:$0xff]
      %v916 = vld [vmem:[#allocation2 + $0x38] sm:$0x1]
      %v917 = vld [vmem:[#allocation2 + $0x40] sm:$0xff]
      %v918 = vld [vmem:[#allocation2 + $0x48] sm:$0xff]
      %v919 = vld [vmem:[#allocation2 + $0x50] sm:$0xff]
      %v920 = vld [vmem:[#allocation2 + $0x58] sm:$0x1]
      %v921 = vld [vmem:[#allocation2 + $0x60] sm:$0xff]
      %v922 = vld [vmem:[#allocation2 + $0x68] sm:$0xff]
      %v923 = vld [vmem:[#allocation2 + $0x70] sm:$0xff]
      %v924 = vld [vmem:[#allocation2 + $0x78] sm:$0x1]
      %v925 = vld [vmem:[#allocation2 + $0x80] sm:$0xff]
      %v926 = vld [vmem:[#allocation2 + $0x88] sm:$0xff]
      %v927 = vld [vmem:[#allocation2 + $0x90] sm:$0xff]
      %v928 = vld [vmem:[#allocation2 + $0x98] sm:$0x1]
      %v929 = vld [vmem:[#allocation2 + $0xa0] sm:$0xff]
      %v930 = vld [vmem:[#allocation2 + $0xa8] sm:$0xff]
      %v931 = vld [vmem:[#allocation2 + $0xb0] sm:$0xff]
      %v932 = vld [vmem:[#allocation2 + $0xb8] sm:$0x1]
      %v933 = vld [vmem:[#allocation2 + $0xc0] sm:$0xff]
      %v934 = vld [vmem:[#allocation2 + $0xc8] sm:$0xff]
      %v935 = vld [vmem:[#allocation2 + $0xd0] sm:$0xff]
      %v936 = vld [vmem:[#allocation2 + $0xd8] sm:$0x1]
      %v937 = vld [vmem:[#allocation2 + $0xe0] sm:$0xff]
      %v938 = vld [vmem:[#allocation2 + $0xe8] sm:$0xff]
      %v939 = vld [vmem:[#allocation2 + $0xf0] sm:$0xff]
      %v940 = vld [vmem:[#allocation2 + $0xf8] sm:$0x1]
      %v941 = vld [vmem:[#allocation2 + $0x100] sm:$0xff]
      %v942 = vld [vmem:[#allocation2 + $0x108] sm:$0xff]
      %v943 = vld [vmem:[#allocation2 + $0x110] sm:$0xff]
      %v944 = vld [vmem:[#allocation2 + $0x118] sm:$0x1]
      %v945 = vld [vmem:[#allocation2 + $0x120] sm:$0xff]
      %v946 = vld [vmem:[#allocation2 + $0x128] sm:$0xff]
      %v947 = vld [vmem:[#allocation2 + $0x130] sm:$0xff]
      %v948 = vld [vmem:[#allocation2 + $0x138] sm:$0x1]
      %v949 = vld [vmem:[#allocation2 + $0x140] sm:$0xff]
      %v950 = vld [vmem:[#allocation2 + $0x148] sm:$0xff]
      %v951 = vld [vmem:[#allocation2 + $0x150] sm:$0xff]
      %v952 = vld [vmem:[#allocation2 + $0x158] sm:$0x1]
      %v953 = vld [vmem:[#allocation2 + $0x160] sm:$0xff]
      %v954 = vld [vmem:[#allocation2 + $0x168] sm:$0xff]
      %v955 = vld [vmem:[#allocation2 + $0x170] sm:$0xff]
      %v956 = vld [vmem:[#allocation2 + $0x178] sm:$0x1]
      %v957 = vld [vmem:[#allocation2 + $0x180] sm:$0xff]
      %v958 = vld [vmem:[#allocation2 + $0x188] sm:$0xff]
      %v959 = vld [vmem:[#allocation2 + $0x190] sm:$0xff]
      %v960 = vld [vmem:[#allocation2 + $0x198] sm:$0x1]
      %v961 = vld [vmem:[#allocation2 + $0x1a0] sm:$0xff]
      %v962 = vld [vmem:[#allocation2 + $0x1a8] sm:$0xff]
      %v963 = vld [vmem:[#allocation2 + $0x1b0] sm:$0xff]
      %v964 = vld [vmem:[#allocation2 + $0x1b8] sm:$0x1]
      %v965 = vld [vmem:[#allocation2 + $0x1c0] sm:$0xff]
      %v966 = vld [vmem:[#allocation2 + $0x1c8] sm:$0xff]
      %v967 = vld [vmem:[#allocation2 + $0x1d0] sm:$0xff]
      %v968 = vld [vmem:[#allocation2 + $0x1d8] sm:$0x1]
      %v969 = vld [vmem:[#allocation2 + $0x1e0] sm:$0xff]
      %v970 = vld [vmem:[#allocation2 + $0x1e8] sm:$0xff]
      %v971 = vld [vmem:[#allocation2 + $0x1f0] sm:$0xff]
      %v972 = vld [vmem:[#allocation2 + $0x1f8] sm:$0x1]
      %v973 = vld [vmem:[#allocation2 + $0x200] sm:$0xff]
      %v974 = vld [vmem:[#allocation2 + $0x208] sm:$0xff]
      %v975 = vld [vmem:[#allocation2 + $0x210] sm:$0xff]
      %v976 = vld [vmem:[#allocation2 + $0x218] sm:$0x1]
      %v977 = vld [vmem:[#allocation2 + $0x220] sm:$0xff]
      %v978 = vld [vmem:[#allocation2 + $0x228] sm:$0xff]
      %v979 = vld [vmem:[#allocation2 + $0x230] sm:$0xff]
      %v980 = vld [vmem:[#allocation2 + $0x238] sm:$0x1]
      %v981 = vld [vmem:[%s4] sm:$0x3]
      %v982 = vld [vmem:[%s4 + $0x2] sm:$0x3]
      %v983 = vld [vmem:[%s4 + $0x4] sm:$0x3]
      %v984 = vunpack.c.l.bf16 %v981
      %v985 = vunpack.c.l.bf16 %v982
      %v986 = vunpack.c.l.bf16 %v983
      %v987 = vperm.slane %v984, 0
      %v988 = vmul.f32 %v909, %v987
      %v989 = vmul.f32 %v910, %v987
      %v990 = vmul.f32 %v911, %v987
      %v991 = vmul.f32 %v913, %v987
      %v992 = vmul.f32 %v914, %v987
      %v993 = vmul.f32 %v915, %v987
      %v994 = vmul.f32 %v917, %v987
      %v995 = vmul.f32 %v918, %v987
      %v996 = vmul.f32 %v919, %v987
      %v997 = vmul.f32 %v921, %v987
      %v998 = vmul.f32 %v922, %v987
      %v999 = vmul.f32 %v923, %v987
      %v1000 = vmul.f32 %v925, %v987
      %v1001 = vmul.f32 %v926, %v987
      %v1002 = vmul.f32 %v927, %v987
      %v1003 = vmul.f32 %v929, %v987
      %v1004 = vmul.f32 %v930, %v987
      %v1005 = vmul.f32 %v931, %v987
      %v1006 = vmul.f32 %v933, %v987
      %v1007 = vmul.f32 %v934, %v987
      %v1008 = vmul.f32 %v935, %v987
      %v1009 = vmul.f32 %v937, %v987
      %v1010 = vmul.f32 %v938, %v987
      %v1011 = vmul.f32 %v939, %v987
      %v1012 = vmul.f32 %v941, %v987
      %v1013 = vmul.f32 %v942, %v987
      %v1014 = vmul.f32 %v943, %v987
      %v1015 = vmul.f32 %v945, %v987
      %v1016 = vmul.f32 %v946, %v987
      %v1017 = vmul.f32 %v947, %v987
      %v1018 = vmul.f32 %v949, %v987
      %v1019 = vmul.f32 %v950, %v987
      %v1020 = vmul.f32 %v951, %v987
      %v1021 = vmul.f32 %v953, %v987
      %v1022 = vmul.f32 %v954, %v987
      %v1023 = vmul.f32 %v955, %v987
      %v1024 = vmul.f32 %v957, %v987
      %v1025 = vmul.f32 %v958, %v987
      %v1026 = vmul.f32 %v959, %v987
      %v1027 = vmul.f32 %v961, %v987
      %v1028 = vmul.f32 %v962, %v987
      %v1029 = vmul.f32 %v963, %v987
      %v1030 = vmul.f32 %v965, %v987
      %v1031 = vmul.f32 %v966, %v987
      %v1032 = vmul.f32 %v967, %v987
      %v1033 = vmul.f32 %v969, %v987
      %v1034 = vmul.f32 %v970, %v987
      %v1035 = vmul.f32 %v971, %v987
      %v1036 = vperm.slane %v984, 1
      %v1037 = vmul.f32 %v910, %v1036
      %v1038 = vmul.f32 %v911, %v1036
      %v1039 = vmul.f32 %v914, %v1036
      %v1040 = vmul.f32 %v915, %v1036
      %v1041 = vmul.f32 %v918, %v1036
      %v1042 = vmul.f32 %v919, %v1036
      %v1043 = vmul.f32 %v922, %v1036
      %v1044 = vmul.f32 %v923, %v1036
      %v1045 = vmul.f32 %v926, %v1036
      %v1046 = vmul.f32 %v927, %v1036
      %v1047 = vmul.f32 %v930, %v1036
      %v1048 = vmul.f32 %v931, %v1036
      %v1049 = vmul.f32 %v934, %v1036
      %v1050 = vmul.f32 %v935, %v1036
      %v1051 = vmul.f32 %v938, %v1036
      %v1052 = vmul.f32 %v939, %v1036
      %v1053 = vmul.f32 %v942, %v1036
      %v1054 = vmul.f32 %v943, %v1036
      %v1055 = vmul.f32 %v946, %v1036
      %v1056 = vmul.f32 %v947, %v1036
      %v1057 = vmul.f32 %v950, %v1036
      %v1058 = vmul.f32 %v951, %v1036
      %v1059 = vmul.f32 %v954, %v1036
      %v1060 = vmul.f32 %v955, %v1036
      %v1061 = vmul.f32 %v958, %v1036
      %v1062 = vmul.f32 %v959, %v1036
      %v1063 = vmul.f32 %v962, %v1036
      %v1064 = vmul.f32 %v963, %v1036
      %v1065 = vmul.f32 %v966, %v1036
      %v1066 = vmul.f32 %v967, %v1036
      %v1067 = vmul.f32 %v970, %v1036
      %v1068 = vmul.f32 %v971, %v1036
      %vm1101 = vcmask 1046528
      %v1102 = vrot.slane %v1037, 1
      %v1103 = vrot.slane %v1038, 1
      %v1104 = vsel %vm1101, %v1102, %v1103
      %v1105 = vrot.slane %v1039, 1
      %v1106 = vrot.slane %v1040, 1
      %v1107 = vsel %vm1101, %v1105, %v1106
      %v1108 = vrot.slane %v1041, 1
      %v1109 = vrot.slane %v1042, 1
      %v1110 = vsel %vm1101, %v1108, %v1109
      %v1111 = vrot.slane %v1043, 1
      %v1112 = vrot.slane %v1044, 1
      %v1113 = vsel %vm1101, %v1111, %v1112
      %v1114 = vrot.slane %v1045, 1
      %v1115 = vrot.slane %v1046, 1
      %v1116 = vsel %vm1101, %v1114, %v1115
      %v1117 = vrot.slane %v1047, 1
      %v1118 = vrot.slane %v1048, 1
      %v1119 = vsel %vm1101, %v1117, %v1118
      %v1120 = vrot.slane %v1049, 1
      %v1121 = vrot.slane %v1050, 1
      %v1122 = vsel %vm1101, %v1120, %v1121
      %v1123 = vrot.slane %v1051, 1
      %v1124 = vrot.slane %v1052, 1
      %v1125 = vsel %vm1101, %v1123, %v1124
      %v1126 = vrot.slane %v1053, 1
      %v1127 = vrot.slane %v1054, 1
      %v1128 = vsel %vm1101, %v1126, %v1127
      %v1129 = vrot.slane %v1055, 1
      %v1130 = vrot.slane %v1056, 1
      %v1131 = vsel %vm1101, %v1129, %v1130
      %v1132 = vrot.slane %v1057, 1
      %v1133 = vrot.slane %v1058, 1
      %v1134 = vsel %vm1101, %v1132, %v1133
      %v1135 = vrot.slane %v1059, 1
      %v1136 = vrot.slane %v1060, 1
      %v1137 = vsel %vm1101, %v1135, %v1136
      %v1138 = vrot.slane %v1061, 1
      %v1139 = vrot.slane %v1062, 1
      %v1140 = vsel %vm1101, %v1138, %v1139
      %v1141 = vrot.slane %v1063, 1
      %v1142 = vrot.slane %v1064, 1
      %v1143 = vsel %vm1101, %v1141, %v1142
      %v1144 = vrot.slane %v1065, 1
      %v1145 = vrot.slane %v1066, 1
      %v1146 = vsel %vm1101, %v1144, %v1145
      %v1147 = vrot.slane %v1067, 1
      %v1148 = vrot.slane %v1068, 1
      %v1149 = vsel %vm1101, %v1147, %v1148
      %v1198 = vadd.f32 %v988, %v1102
      %v1199 = vadd.f32 %v989, %v1104
      %v1200 = vadd.f32 %v990, %v1103
      %v1201 = vadd.f32 %v991, %v1105
      %v1202 = vadd.f32 %v992, %v1107
      %v1203 = vadd.f32 %v993, %v1106
      %v1204 = vadd.f32 %v994, %v1108
      %v1205 = vadd.f32 %v995, %v1110
      %v1206 = vadd.f32 %v996, %v1109
      %v1207 = vadd.f32 %v997, %v1111
      %v1208 = vadd.f32 %v998, %v1113
      %v1209 = vadd.f32 %v999, %v1112
      %v1210 = vadd.f32 %v1000, %v1114
      %v1211 = vadd.f32 %v1001, %v1116
      %v1212 = vadd.f32 %v1002, %v1115
      %v1213 = vadd.f32 %v1003, %v1117
      %v1214 = vadd.f32 %v1004, %v1119
      %v1215 = vadd.f32 %v1005, %v1118
      %v1216 = vadd.f32 %v1006, %v1120
      %v1217 = vadd.f32 %v1007, %v1122
      %v1218 = vadd.f32 %v1008, %v1121
      %v1219 = vadd.f32 %v1009, %v1123
      %v1220 = vadd.f32 %v1010, %v1125
      %v1221 = vadd.f32 %v1011, %v1124
      %v1222 = vadd.f32 %v1012, %v1126
      %v1223 = vadd.f32 %v1013, %v1128
      %v1224 = vadd.f32 %v1014, %v1127
      %v1225 = vadd.f32 %v1015, %v1129
      %v1226 = vadd.f32 %v1016, %v1131
      %v1227 = vadd.f32 %v1017, %v1130
      %v1228 = vadd.f32 %v1018, %v1132
      %v1229 = vadd.f32 %v1019, %v1134
      %v1230 = vadd.f32 %v1020, %v1133
      %v1231 = vadd.f32 %v1021, %v1135
      %v1232 = vadd.f32 %v1022, %v1137
      %v1233 = vadd.f32 %v1023, %v1136
      %v1234 = vadd.f32 %v1024, %v1138
      %v1235 = vadd.f32 %v1025, %v1140
      %v1236 = vadd.f32 %v1026, %v1139
      %v1237 = vadd.f32 %v1027, %v1141
      %v1238 = vadd.f32 %v1028, %v1143
      %v1239 = vadd.f32 %v1029, %v1142
      %v1240 = vadd.f32 %v1030, %v1144
      %v1241 = vadd.f32 %v1031, %v1146
      %v1242 = vadd.f32 %v1032, %v1145
      %v1243 = vadd.f32 %v1033, %v1147
      %v1244 = vadd.f32 %v1034, %v1149
      %v1245 = vadd.f32 %v1035, %v1148
      %v1246 = vperm.slane %v984, 2
      %v1247 = vmul.f32 %v910, %v1246
      %v1248 = vmul.f32 %v911, %v1246
      %v1249 = vmul.f32 %v912, %v1246
      %v1250 = vmul.f32 %v914, %v1246
      %v1251 = vmul.f32 %v915, %v1246
      %v1252 = vmul.f32 %v916, %v1246
      %v1253 = vmul.f32 %v918, %v1246
      %v1254 = vmul.f32 %v919, %v1246
      %v1255 = vmul.f32 %v920, %v1246
      %v1256 = vmul.f32 %v922, %v1246
      %v1257 = vmul.f32 %v923, %v1246
      %v1258 = vmul.f32 %v924, %v1246
      %v1259 = vmul.f32 %v926, %v1246
      %v1260 = vmul.f32 %v927, %v1246
      %v1261 = vmul.f32 %v928, %v1246
      %v1262 = vmul.f32 %v930, %v1246
      %v1263 = vmul.f32 %v931, %v1246
      %v1264 = vmul.f32 %v932, %v1246
      %v1265 = vmul.f32 %v934, %v1246
      %v1266 = vmul.f32 %v935, %v1246
      %v1267 = vmul.f32 %v936, %v1246
      %v1268 = vmul.f32 %v938, %v1246
      %v1269 = vmul.f32 %v939, %v1246
      %v1270 = vmul.f32 %v940, %v1246
      %v1271 = vmul.f32 %v942, %v1246
      %v1272 = vmul.f32 %v943, %v1246
      %v1273 = vmul.f32 %v944, %v1246
      %v1274 = vmul.f32 %v946, %v1246
      %v1275 = vmul.f32 %v947, %v1246
      %v1276 = vmul.f32 %v948, %v1246
      %v1277 = vmul.f32 %v950, %v1246
      %v1278 = vmul.f32 %v951, %v1246
      %v1279 = vmul.f32 %v952, %v1246
      %v1280 = vmul.f32 %v954, %v1246
      %v1281 = vmul.f32 %v955, %v1246
      %v1282 = vmul.f32 %v956, %v1246
      %v1283 = vmul.f32 %v958, %v1246
      %v1284 = vmul.f32 %v959, %v1246
      %v1285 = vmul.f32 %v960, %v1246
      %v1286 = vmul.f32 %v962, %v1246
      %v1287 = vmul.f32 %v963, %v1246
      %v1288 = vmul.f32 %v964, %v1246
      %v1289 = vmul.f32 %v966, %v1246
      %v1290 = vmul.f32 %v967, %v1246
      %v1291 = vmul.f32 %v968, %v1246
      %v1292 = vmul.f32 %v970, %v1246
      %v1293 = vmul.f32 %v971, %v1246
      %v1294 = vmul.f32 %v972, %v1246
      %vm1343 = vcmask 1045504
      %v1344 = vrot.slane %v1247, 2
      %v1345 = vrot.slane %v1248, 2
      %v1346 = vsel %vm1343, %v1344, %v1345
      %v1347 = vrot.slane %v1249, 2
      %v1348 = vsel %vm1343, %v1345, %v1347
      %v1349 = vrot.slane %v1250, 2
      %v1350 = vrot.slane %v1251, 2
      %v1351 = vsel %vm1343, %v1349, %v1350
      %v1352 = vrot.slane %v1252, 2
      %v1353 = vsel %vm1343, %v1350, %v1352
      %v1354 = vrot.slane %v1253, 2
      %v1355 = vrot.slane %v1254, 2
      %v1356 = vsel %vm1343, %v1354, %v1355
      %v1357 = vrot.slane %v1255, 2
      %v1358 = vsel %vm1343, %v1355, %v1357
      %v1359 = vrot.slane %v1256, 2
      %v1360 = vrot.slane %v1257, 2
      %v1361 = vsel %vm1343, %v1359, %v1360
      %v1362 = vrot.slane %v1258, 2
      %v1363 = vsel %vm1343, %v1360, %v1362
      %v1364 = vrot.slane %v1259, 2
      %v1365 = vrot.slane %v1260, 2
      %v1366 = vsel %vm1343, %v1364, %v1365
      %v1367 = vrot.slane %v1261, 2
      %v1368 = vsel %vm1343, %v1365, %v1367
      %v1369 = vrot.slane %v1262, 2
      %v1370 = vrot.slane %v1263, 2
      %v1371 = vsel %vm1343, %v1369, %v1370
      %v1372 = vrot.slane %v1264, 2
      %v1373 = vsel %vm1343, %v1370, %v1372
      %v1374 = vrot.slane %v1265, 2
      %v1375 = vrot.slane %v1266, 2
      %v1376 = vsel %vm1343, %v1374, %v1375
      %v1377 = vrot.slane %v1267, 2
      %v1378 = vsel %vm1343, %v1375, %v1377
      %v1379 = vrot.slane %v1268, 2
      %v1380 = vrot.slane %v1269, 2
      %v1381 = vsel %vm1343, %v1379, %v1380
      %v1382 = vrot.slane %v1270, 2
      %v1383 = vsel %vm1343, %v1380, %v1382
      %v1384 = vrot.slane %v1271, 2
      %v1385 = vrot.slane %v1272, 2
      %v1386 = vsel %vm1343, %v1384, %v1385
      %v1387 = vrot.slane %v1273, 2
      %v1388 = vsel %vm1343, %v1385, %v1387
      %v1389 = vrot.slane %v1274, 2
      %v1390 = vrot.slane %v1275, 2
      %v1391 = vsel %vm1343, %v1389, %v1390
      %v1392 = vrot.slane %v1276, 2
      %v1393 = vsel %vm1343, %v1390, %v1392
      %v1394 = vrot.slane %v1277, 2
      %v1395 = vrot.slane %v1278, 2
      %v1396 = vsel %vm1343, %v1394, %v1395
      %v1397 = vrot.slane %v1279, 2
      %v1398 = vsel %vm1343, %v1395, %v1397
      %v1399 = vrot.slane %v1280, 2
      %v1400 = vrot.slane %v1281, 2
      %v1401 = vsel %vm1343, %v1399, %v1400
      %v1402 = vrot.slane %v1282, 2
      %v1403 = vsel %vm1343, %v1400, %v1402
      %v1404 = vrot.slane %v1283, 2
      %v1405 = vrot.slane %v1284, 2
      %v1406 = vsel %vm1343, %v1404, %v1405
      %v1407 = vrot.slane %v1285, 2
      %v1408 = vsel %vm1343, %v1405, %v1407
      %v1409 = vrot.slane %v1286, 2
      %v1410 = vrot.slane %v1287, 2
      %v1411 = vsel %vm1343, %v1409, %v1410
      %v1412 = vrot.slane %v1288, 2
      %v1413 = vsel %vm1343, %v1410, %v1412
      %v1414 = vrot.slane %v1289, 2
      %v1415 = vrot.slane %v1290, 2
      %v1416 = vsel %vm1343, %v1414, %v1415
      %v1417 = vrot.slane %v1291, 2
      %v1418 = vsel %vm1343, %v1415, %v1417
      %v1419 = vrot.slane %v1292, 2
      %v1420 = vrot.slane %v1293, 2
      %v1421 = vsel %vm1343, %v1419, %v1420
      %v1422 = vrot.slane %v1294, 2
      %v1423 = vsel %vm1343, %v1420, %v1422
      %v1472 = vadd.f32 %v1198, %v1344
      %v1473 = vadd.f32 %v1199, %v1346
      %v1474 = vadd.f32 %v1200, %v1348
      %v1475 = vadd.f32 %v1201, %v1349
      %v1476 = vadd.f32 %v1202, %v1351
      %v1477 = vadd.f32 %v1203, %v1353
      %v1478 = vadd.f32 %v1204, %v1354
      %v1479 = vadd.f32 %v1205, %v1356
      %v1480 = vadd.f32 %v1206, %v1358
      %v1481 = vadd.f32 %v1207, %v1359
      %v1482 = vadd.f32 %v1208, %v1361
      %v1483 = vadd.f32 %v1209, %v1363
      %v1484 = vadd.f32 %v1210, %v1364
      %v1485 = vadd.f32 %v1211, %v1366
      %v1486 = vadd.f32 %v1212, %v1368
      %v1487 = vadd.f32 %v1213, %v1369
      %v1488 = vadd.f32 %v1214, %v1371
      %v1489 = vadd.f32 %v1215, %v1373
      %v1490 = vadd.f32 %v1216, %v1374
      %v1491 = vadd.f32 %v1217, %v1376
      %v1492 = vadd.f32 %v1218, %v1378
      %v1493 = vadd.f32 %v1219, %v1379
      %v1494 = vadd.f32 %v1220, %v1381
      %v1495 = vadd.f32 %v1221, %v1383
      %v1496 = vadd.f32 %v1222, %v1384
      %v1497 = vadd.f32 %v1223, %v1386
      %v1498 = vadd.f32 %v1224, %v1388
      %v1499 = vadd.f32 %v1225, %v1389
      %v1500 = vadd.f32 %v1226, %v1391
      %v1501 = vadd.f32 %v1227, %v1393
      %v1502 = vadd.f32 %v1228, %v1394
      %v1503 = vadd.f32 %v1229, %v1396
      %v1504 = vadd.f32 %v1230, %v1398
      %v1505 = vadd.f32 %v1231, %v1399
      %v1506 = vadd.f32 %v1232, %v1401
      %v1507 = vadd.f32 %v1233, %v1403
      %v1508 = vadd.f32 %v1234, %v1404
      %v1509 = vadd.f32 %v1235, %v1406
      %v1510 = vadd.f32 %v1236, %v1408
      %v1511 = vadd.f32 %v1237, %v1409
      %v1512 = vadd.f32 %v1238, %v1411
      %v1513 = vadd.f32 %v1239, %v1413
      %v1514 = vadd.f32 %v1240, %v1414
      %v1515 = vadd.f32 %v1241, %v1416
      %v1516 = vadd.f32 %v1242, %v1418
      %v1517 = vadd.f32 %v1243, %v1419
      %v1518 = vadd.f32 %v1244, %v1421
      %v1519 = vadd.f32 %v1245, %v1423
      %v1520 = vperm.slane %v985, 0
      %v1521 = vmul.f32 %v913, %v1520
      %v1522 = vmul.f32 %v914, %v1520
      %v1523 = vmul.f32 %v915, %v1520
      %v1524 = vmul.f32 %v917, %v1520
      %v1525 = vmul.f32 %v918, %v1520
      %v1526 = vmul.f32 %v919, %v1520
      %v1527 = vmul.f32 %v921, %v1520
      %v1528 = vmul.f32 %v922, %v1520
      %v1529 = vmul.f32 %v923, %v1520
      %v1530 = vmul.f32 %v925, %v1520
      %v1531 = vmul.f32 %v926, %v1520
      %v1532 = vmul.f32 %v927, %v1520
      %v1533 = vmul.f32 %v929, %v1520
      %v1534 = vmul.f32 %v930, %v1520
      %v1535 = vmul.f32 %v931, %v1520
      %v1536 = vmul.f32 %v933, %v1520
      %v1537 = vmul.f32 %v934, %v1520
      %v1538 = vmul.f32 %v935, %v1520
      %v1539 = vmul.f32 %v937, %v1520
      %v1540 = vmul.f32 %v938, %v1520
      %v1541 = vmul.f32 %v939, %v1520
      %v1542 = vmul.f32 %v941, %v1520
      %v1543 = vmul.f32 %v942, %v1520
      %v1544 = vmul.f32 %v943, %v1520
      %v1545 = vmul.f32 %v945, %v1520
      %v1546 = vmul.f32 %v946, %v1520
      %v1547 = vmul.f32 %v947, %v1520
      %v1548 = vmul.f32 %v949, %v1520
      %v1549 = vmul.f32 %v950, %v1520
      %v1550 = vmul.f32 %v951, %v1520
      %v1551 = vmul.f32 %v953, %v1520
      %v1552 = vmul.f32 %v954, %v1520
      %v1553 = vmul.f32 %v955, %v1520
      %v1554 = vmul.f32 %v957, %v1520
      %v1555 = vmul.f32 %v958, %v1520
      %v1556 = vmul.f32 %v959, %v1520
      %v1557 = vmul.f32 %v961, %v1520
      %v1558 = vmul.f32 %v962, %v1520
      %v1559 = vmul.f32 %v963, %v1520
      %v1560 = vmul.f32 %v965, %v1520
      %v1561 = vmul.f32 %v966, %v1520
      %v1562 = vmul.f32 %v967, %v1520
      %v1563 = vmul.f32 %v969, %v1520
      %v1564 = vmul.f32 %v970, %v1520
      %v1565 = vmul.f32 %v971, %v1520
      %v1566 = vmul.f32 %v973, %v1520
      %v1567 = vmul.f32 %v974, %v1520
      %v1568 = vmul.f32 %v975, %v1520
      %v1569 = vadd.f32 %v1472, %v1521
      %v1570 = vadd.f32 %v1473, %v1522
      %v1571 = vadd.f32 %v1474, %v1523
      %v1572 = vadd.f32 %v1475, %v1524
      %v1573 = vadd.f32 %v1476, %v1525
      %v1574 = vadd.f32 %v1477, %v1526
      %v1575 = vadd.f32 %v1478, %v1527
      %v1576 = vadd.f32 %v1479, %v1528
      %v1577 = vadd.f32 %v1480, %v1529
      %v1578 = vadd.f32 %v1481, %v1530
      %v1579 = vadd.f32 %v1482, %v1531
      %v1580 = vadd.f32 %v1483, %v1532
      %v1581 = vadd.f32 %v1484, %v1533
      %v1582 = vadd.f32 %v1485, %v1534
      %v1583 = vadd.f32 %v1486, %v1535
      %v1584 = vadd.f32 %v1487, %v1536
      %v1585 = vadd.f32 %v1488, %v1537
      %v1586 = vadd.f32 %v1489, %v1538
      %v1587 = vadd.f32 %v1490, %v1539
      %v1588 = vadd.f32 %v1491, %v1540
      %v1589 = vadd.f32 %v1492, %v1541
      %v1590 = vadd.f32 %v1493, %v1542
      %v1591 = vadd.f32 %v1494, %v1543
      %v1592 = vadd.f32 %v1495, %v1544
      %v1593 = vadd.f32 %v1496, %v1545
      %v1594 = vadd.f32 %v1497, %v1546
      %v1595 = vadd.f32 %v1498, %v1547
      %v1596 = vadd.f32 %v1499, %v1548
      %v1597 = vadd.f32 %v1500, %v1549
      %v1598 = vadd.f32 %v1501, %v1550
      %v1599 = vadd.f32 %v1502, %v1551
      %v1600 = vadd.f32 %v1503, %v1552
      %v1601 = vadd.f32 %v1504, %v1553
      %v1602 = vadd.f32 %v1505, %v1554
      %v1603 = vadd.f32 %v1506, %v1555
      %v1604 = vadd.f32 %v1507, %v1556
      %v1605 = vadd.f32 %v1508, %v1557
      %v1606 = vadd.f32 %v1509, %v1558
      %v1607 = vadd.f32 %v1510, %v1559
      %v1608 = vadd.f32 %v1511, %v1560
      %v1609 = vadd.f32 %v1512, %v1561
      %v1610 = vadd.f32 %v1513, %v1562
      %v1611 = vadd.f32 %v1514, %v1563
      %v1612 = vadd.f32 %v1515, %v1564
      %v1613 = vadd.f32 %v1516, %v1565
      %v1614 = vadd.f32 %v1517, %v1566
      %v1615 = vadd.f32 %v1518, %v1567
      %v1616 = vadd.f32 %v1519, %v1568
      %v1617 = vperm.slane %v985, 1
      %v1618 = vmul.f32 %v914, %v1617
      %v1619 = vmul.f32 %v915, %v1617
      %v1620 = vmul.f32 %v918, %v1617
      %v1621 = vmul.f32 %v919, %v1617
      %v1622 = vmul.f32 %v922, %v1617
      %v1623 = vmul.f32 %v923, %v1617
      %v1624 = vmul.f32 %v926, %v1617
      %v1625 = vmul.f32 %v927, %v1617
      %v1626 = vmul.f32 %v930, %v1617
      %v1627 = vmul.f32 %v931, %v1617
      %v1628 = vmul.f32 %v934, %v1617
      %v1629 = vmul.f32 %v935, %v1617
      %v1630 = vmul.f32 %v938, %v1617
      %v1631 = vmul.f32 %v939, %v1617
      %v1632 = vmul.f32 %v942, %v1617
      %v1633 = vmul.f32 %v943, %v1617
      %v1634 = vmul.f32 %v946, %v1617
      %v1635 = vmul.f32 %v947, %v1617
      %v1636 = vmul.f32 %v950, %v1617
      %v1637 = vmul.f32 %v951, %v1617
      %v1638 = vmul.f32 %v954, %v1617
      %v1639 = vmul.f32 %v955, %v1617
      %v1640 = vmul.f32 %v958, %v1617
      %v1641 = vmul.f32 %v959, %v1617
      %v1642 = vmul.f32 %v962, %v1617
      %v1643 = vmul.f32 %v963, %v1617
      %v1644 = vmul.f32 %v966, %v1617
      %v1645 = vmul.f32 %v967, %v1617
      %v1646 = vmul.f32 %v970, %v1617
      %v1647 = vmul.f32 %v971, %v1617
      %v1648 = vmul.f32 %v974, %v1617
      %v1649 = vmul.f32 %v975, %v1617
      %v1682 = vrot.slane %v1618, 1
      %v1683 = vrot.slane %v1619, 1
      %v1684 = vsel %vm1101, %v1682, %v1683
      %v1685 = vrot.slane %v1620, 1
      %v1686 = vrot.slane %v1621, 1
      %v1687 = vsel %vm1101, %v1685, %v1686
      %v1688 = vrot.slane %v1622, 1
      %v1689 = vrot.slane %v1623, 1
      %v1690 = vsel %vm1101, %v1688, %v1689
      %v1691 = vrot.slane %v1624, 1
      %v1692 = vrot.slane %v1625, 1
      %v1693 = vsel %vm1101, %v1691, %v1692
      %v1694 = vrot.slane %v1626, 1
      %v1695 = vrot.slane %v1627, 1
      %v1696 = vsel %vm1101, %v1694, %v1695
      %v1697 = vrot.slane %v1628, 1
      %v1698 = vrot.slane %v1629, 1
      %v1699 = vsel %vm1101, %v1697, %v1698
      %v1700 = vrot.slane %v1630, 1
      %v1701 = vrot.slane %v1631, 1
      %v1702 = vsel %vm1101, %v1700, %v1701
      %v1703 = vrot.slane %v1632, 1
      %v1704 = vrot.slane %v1633, 1
      %v1705 = vsel %vm1101, %v1703, %v1704
      %v1706 = vrot.slane %v1634, 1
      %v1707 = vrot.slane %v1635, 1
      %v1708 = vsel %vm1101, %v1706, %v1707
      %v1709 = vrot.slane %v1636, 1
      %v1710 = vrot.slane %v1637, 1
      %v1711 = vsel %vm1101, %v1709, %v1710
      %v1712 = vrot.slane %v1638, 1
      %v1713 = vrot.slane %v1639, 1
      %v1714 = vsel %vm1101, %v1712, %v1713
      %v1715 = vrot.slane %v1640, 1
      %v1716 = vrot.slane %v1641, 1
      %v1717 = vsel %vm1101, %v1715, %v1716
      %v1718 = vrot.slane %v1642, 1
      %v1719 = vrot.slane %v1643, 1
      %v1720 = vsel %vm1101, %v1718, %v1719
      %v1721 = vrot.slane %v1644, 1
      %v1722 = vrot.slane %v1645, 1
      %v1723 = vsel %vm1101, %v1721, %v1722
      %v1724 = vrot.slane %v1646, 1
      %v1725 = vrot.slane %v1647, 1
      %v1726 = vsel %vm1101, %v1724, %v1725
      %v1727 = vrot.slane %v1648, 1
      %v1728 = vrot.slane %v1649, 1
      %v1729 = vsel %vm1101, %v1727, %v1728
      %v1778 = vadd.f32 %v1569, %v1682
      %v1779 = vadd.f32 %v1570, %v1684
      %v1780 = vadd.f32 %v1571, %v1683
      %v1781 = vadd.f32 %v1572, %v1685
      %v1782 = vadd.f32 %v1573, %v1687
      %v1783 = vadd.f32 %v1574, %v1686
      %v1784 = vadd.f32 %v1575, %v1688
      %v1785 = vadd.f32 %v1576, %v1690
      %v1786 = vadd.f32 %v1577, %v1689
      %v1787 = vadd.f32 %v1578, %v1691
      %v1788 = vadd.f32 %v1579, %v1693
      %v1789 = vadd.f32 %v1580, %v1692
      %v1790 = vadd.f32 %v1581, %v1694
      %v1791 = vadd.f32 %v1582, %v1696
      %v1792 = vadd.f32 %v1583, %v1695
      %v1793 = vadd.f32 %v1584, %v1697
      %v1794 = vadd.f32 %v1585, %v1699
      %v1795 = vadd.f32 %v1586, %v1698
      %v1796 = vadd.f32 %v1587, %v1700
      %v1797 = vadd.f32 %v1588, %v1702
      %v1798 = vadd.f32 %v1589, %v1701
      %v1799 = vadd.f32 %v1590, %v1703
      %v1800 = vadd.f32 %v1591, %v1705
      %v1801 = vadd.f32 %v1592, %v1704
      %v1802 = vadd.f32 %v1593, %v1706
      %v1803 = vadd.f32 %v1594, %v1708
      %v1804 = vadd.f32 %v1595, %v1707
      %v1805 = vadd.f32 %v1596, %v1709
      %v1806 = vadd.f32 %v1597, %v1711
      %v1807 = vadd.f32 %v1598, %v1710
      %v1808 = vadd.f32 %v1599, %v1712
      %v1809 = vadd.f32 %v1600, %v1714
      %v1810 = vadd.f32 %v1601, %v1713
      %v1811 = vadd.f32 %v1602, %v1715
      %v1812 = vadd.f32 %v1603, %v1717
      %v1813 = vadd.f32 %v1604, %v1716
      %v1814 = vadd.f32 %v1605, %v1718
      %v1815 = vadd.f32 %v1606, %v1720
      %v1816 = vadd.f32 %v1607, %v1719
      %v1817 = vadd.f32 %v1608, %v1721
      %v1818 = vadd.f32 %v1609, %v1723
      %v1819 = vadd.f32 %v1610, %v1722
      %v1820 = vadd.f32 %v1611, %v1724
      %v1821 = vadd.f32 %v1612, %v1726
      %v1822 = vadd.f32 %v1613, %v1725
      %v1823 = vadd.f32 %v1614, %v1727
      %v1824 = vadd.f32 %v1615, %v1729
      %v1825 = vadd.f32 %v1616, %v1728
      %v1826 = vperm.slane %v985, 2
      %v1827 = vmul.f32 %v914, %v1826
      %v1828 = vmul.f32 %v915, %v1826
      %v1829 = vmul.f32 %v916, %v1826
      %v1830 = vmul.f32 %v918, %v1826
      %v1831 = vmul.f32 %v919, %v1826
      %v1832 = vmul.f32 %v920, %v1826
      %v1833 = vmul.f32 %v922, %v1826
      %v1834 = vmul.f32 %v923, %v1826
      %v1835 = vmul.f32 %v924, %v1826
      %v1836 = vmul.f32 %v926, %v1826
      %v1837 = vmul.f32 %v927, %v1826
      %v1838 = vmul.f32 %v928, %v1826
      %v1839 = vmul.f32 %v930, %v1826
      %v1840 = vmul.f32 %v931, %v1826
      %v1841 = vmul.f32 %v932, %v1826
      %v1842 = vmul.f32 %v934, %v1826
      %v1843 = vmul.f32 %v935, %v1826
      %v1844 = vmul.f32 %v936, %v1826
      %v1845 = vmul.f32 %v938, %v1826
      %v1846 = vmul.f32 %v939, %v1826
      %v1847 = vmul.f32 %v940, %v1826
      %v1848 = vmul.f32 %v942, %v1826
      %v1849 = vmul.f32 %v943, %v1826
      %v1850 = vmul.f32 %v944, %v1826
      %v1851 = vmul.f32 %v946, %v1826
      %v1852 = vmul.f32 %v947, %v1826
      %v1853 = vmul.f32 %v948, %v1826
      %v1854 = vmul.f32 %v950, %v1826
      %v1855 = vmul.f32 %v951, %v1826
      %v1856 = vmul.f32 %v952, %v1826
      %v1857 = vmul.f32 %v954, %v1826
      %v1858 = vmul.f32 %v955, %v1826
      %v1859 = vmul.f32 %v956, %v1826
      %v1860 = vmul.f32 %v958, %v1826
      %v1861 = vmul.f32 %v959, %v1826
      %v1862 = vmul.f32 %v960, %v1826
      %v1863 = vmul.f32 %v962, %v1826
      %v1864 = vmul.f32 %v963, %v1826
      %v1865 = vmul.f32 %v964, %v1826
      %v1866 = vmul.f32 %v966, %v1826
      %v1867 = vmul.f32 %v967, %v1826
      %v1868 = vmul.f32 %v968, %v1826
      %v1869 = vmul.f32 %v970, %v1826
      %v1870 = vmul.f32 %v971, %v1826
      %v1871 = vmul.f32 %v972, %v1826
      %v1872 = vmul.f32 %v974, %v1826
      %v1873 = vmul.f32 %v975, %v1826
      %v1874 = vmul.f32 %v976, %v1826
      %v1923 = vrot.slane %v1827, 2
      %v1924 = vrot.slane %v1828, 2
      %v1925 = vsel %vm1343, %v1923, %v1924
      %v1926 = vrot.slane %v1829, 2
      %v1927 = vsel %vm1343, %v1924, %v1926
      %v1928 = vrot.slane %v1830, 2
      %v1929 = vrot.slane %v1831, 2
      %v1930 = vsel %vm1343, %v1928, %v1929
      %v1931 = vrot.slane %v1832, 2
      %v1932 = vsel %vm1343, %v1929, %v1931
      %v1933 = vrot.slane %v1833, 2
      %v1934 = vrot.slane %v1834, 2
      %v1935 = vsel %vm1343, %v1933, %v1934
      %v1936 = vrot.slane %v1835, 2
      %v1937 = vsel %vm1343, %v1934, %v1936
      %v1938 = vrot.slane %v1836, 2
      %v1939 = vrot.slane %v1837, 2
      %v1940 = vsel %vm1343, %v1938, %v1939
      %v1941 = vrot.slane %v1838, 2
      %v1942 = vsel %vm1343, %v1939, %v1941
      %v1943 = vrot.slane %v1839, 2
      %v1944 = vrot.slane %v1840, 2
      %v1945 = vsel %vm1343, %v1943, %v1944
      %v1946 = vrot.slane %v1841, 2
      %v1947 = vsel %vm1343, %v1944, %v1946
      %v1948 = vrot.slane %v1842, 2
      %v1949 = vrot.slane %v1843, 2
      %v1950 = vsel %vm1343, %v1948, %v1949
      %v1951 = vrot.slane %v1844, 2
      %v1952 = vsel %vm1343, %v1949, %v1951
      %v1953 = vrot.slane %v1845, 2
      %v1954 = vrot.slane %v1846, 2
      %v1955 = vsel %vm1343, %v1953, %v1954
      %v1956 = vrot.slane %v1847, 2
      %v1957 = vsel %vm1343, %v1954, %v1956
      %v1958 = vrot.slane %v1848, 2
      %v1959 = vrot.slane %v1849, 2
      %v1960 = vsel %vm1343, %v1958, %v1959
      %v1961 = vrot.slane %v1850, 2
      %v1962 = vsel %vm1343, %v1959, %v1961
      %v1963 = vrot.slane %v1851, 2
      %v1964 = vrot.slane %v1852, 2
      %v1965 = vsel %vm1343, %v1963, %v1964
      %v1966 = vrot.slane %v1853, 2
      %v1967 = vsel %vm1343, %v1964, %v1966
      %v1968 = vrot.slane %v1854, 2
      %v1969 = vrot.slane %v1855, 2
      %v1970 = vsel %vm1343, %v1968, %v1969
      %v1971 = vrot.slane %v1856, 2
      %v1972 = vsel %vm1343, %v1969, %v1971
      %v1973 = vrot.slane %v1857, 2
      %v1974 = vrot.slane %v1858, 2
      %v1975 = vsel %vm1343, %v1973, %v1974
      %v1976 = vrot.slane %v1859, 2
      %v1977 = vsel %vm1343, %v1974, %v1976
      %v1978 = vrot.slane %v1860, 2
      %v1979 = vrot.slane %v1861, 2
      %v1980 = vsel %vm1343, %v1978, %v1979
      %v1981 = vrot.slane %v1862, 2
      %v1982 = vsel %vm1343, %v1979, %v1981
      %v1983 = vrot.slane %v1863, 2
      %v1984 = vrot.slane %v1864, 2
      %v1985 = vsel %vm1343, %v1983, %v1984
      %v1986 = vrot.slane %v1865, 2
      %v1987 = vsel %vm1343, %v1984, %v1986
      %v1988 = vrot.slane %v1866, 2
      %v1989 = vrot.slane %v1867, 2
      %v1990 = vsel %vm1343, %v1988, %v1989
      %v1991 = vrot.slane %v1868, 2
      %v1992 = vsel %vm1343, %v1989, %v1991
      %v1993 = vrot.slane %v1869, 2
      %v1994 = vrot.slane %v1870, 2
      %v1995 = vsel %vm1343, %v1993, %v1994
      %v1996 = vrot.slane %v1871, 2
      %v1997 = vsel %vm1343, %v1994, %v1996
      %v1998 = vrot.slane %v1872, 2
      %v1999 = vrot.slane %v1873, 2
      %v2000 = vsel %vm1343, %v1998, %v1999
      %v2001 = vrot.slane %v1874, 2
      %v2002 = vsel %vm1343, %v1999, %v2001
      %v2051 = vadd.f32 %v1778, %v1923
      %v2052 = vadd.f32 %v1779, %v1925
      %v2053 = vadd.f32 %v1780, %v1927
      %v2054 = vadd.f32 %v1781, %v1928
      %v2055 = vadd.f32 %v1782, %v1930
      %v2056 = vadd.f32 %v1783, %v1932
      %v2057 = vadd.f32 %v1784, %v1933
      %v2058 = vadd.f32 %v1785, %v1935
      %v2059 = vadd.f32 %v1786, %v1937
      %v2060 = vadd.f32 %v1787, %v1938
      %v2061 = vadd.f32 %v1788, %v1940
      %v2062 = vadd.f32 %v1789, %v1942
      %v2063 = vadd.f32 %v1790, %v1943
      %v2064 = vadd.f32 %v1791, %v1945
      %v2065 = vadd.f32 %v1792, %v1947
      %v2066 = vadd.f32 %v1793, %v1948
      %v2067 = vadd.f32 %v1794, %v1950
      %v2068 = vadd.f32 %v1795, %v1952
      %v2069 = vadd.f32 %v1796, %v1953
      %v2070 = vadd.f32 %v1797, %v1955
      %v2071 = vadd.f32 %v1798, %v1957
      %v2072 = vadd.f32 %v1799, %v1958
      %v2073 = vadd.f32 %v1800, %v1960
      %v2074 = vadd.f32 %v1801, %v1962
      %v2075 = vadd.f32 %v1802, %v1963
      %v2076 = vadd.f32 %v1803, %v1965
      %v2077 = vadd.f32 %v1804, %v1967
      %v2078 = vadd.f32 %v1805, %v1968
      %v2079 = vadd.f32 %v1806, %v1970
      %v2080 = vadd.f32 %v1807, %v1972
      %v2081 = vadd.f32 %v1808, %v1973
      %v2082 = vadd.f32 %v1809, %v1975
      %v2083 = vadd.f32 %v1810, %v1977
      %v2084 = vadd.f32 %v1811, %v1978
      %v2085 = vadd.f32 %v1812, %v1980
      %v2086 = vadd.f32 %v1813, %v1982
      %v2087 = vadd.f32 %v1814, %v1983
      %v2088 = vadd.f32 %v1815, %v1985
      %v2089 = vadd.f32 %v1816, %v1987
      %v2090 = vadd.f32 %v1817, %v1988
      %v2091 = vadd.f32 %v1818, %v1990
      %v2092 = vadd.f32 %v1819, %v1992
      %v2093 = vadd.f32 %v1820, %v1993
      %v2094 = vadd.f32 %v1821, %v1995
      %v2095 = vadd.f32 %v1822, %v1997
      %v2096 = vadd.f32 %v1823, %v1998
      %v2097 = vadd.f32 %v1824, %v2000
      %v2098 = vadd.f32 %v1825, %v2002
      %v2099 = vperm.slane %v986, 0
      %v2100 = vmul.f32 %v917, %v2099
      %v2101 = vmul.f32 %v918, %v2099
      %v2102 = vmul.f32 %v919, %v2099
      %v2103 = vmul.f32 %v921, %v2099
      %v2104 = vmul.f32 %v922, %v2099
      %v2105 = vmul.f32 %v923, %v2099
      %v2106 = vmul.f32 %v925, %v2099
      %v2107 = vmul.f32 %v926, %v2099
      %v2108 = vmul.f32 %v927, %v2099
      %v2109 = vmul.f32 %v929, %v2099
      %v2110 = vmul.f32 %v930, %v2099
      %v2111 = vmul.f32 %v931, %v2099
      %v2112 = vmul.f32 %v933, %v2099
      %v2113 = vmul.f32 %v934, %v2099
      %v2114 = vmul.f32 %v935, %v2099
      %v2115 = vmul.f32 %v937, %v2099
      %v2116 = vmul.f32 %v938, %v2099
      %v2117 = vmul.f32 %v939, %v2099
      %v2118 = vmul.f32 %v941, %v2099
      %v2119 = vmul.f32 %v942, %v2099
      %v2120 = vmul.f32 %v943, %v2099
      %v2121 = vmul.f32 %v945, %v2099
      %v2122 = vmul.f32 %v946, %v2099
      %v2123 = vmul.f32 %v947, %v2099
      %v2124 = vmul.f32 %v949, %v2099
      %v2125 = vmul.f32 %v950, %v2099
      %v2126 = vmul.f32 %v951, %v2099
      %v2127 = vmul.f32 %v953, %v2099
      %v2128 = vmul.f32 %v954, %v2099
      %v2129 = vmul.f32 %v955, %v2099
      %v2130 = vmul.f32 %v957, %v2099
      %v2131 = vmul.f32 %v958, %v2099
      %v2132 = vmul.f32 %v959, %v2099
      %v2133 = vmul.f32 %v961, %v2099
      %v2134 = vmul.f32 %v962, %v2099
      %v2135 = vmul.f32 %v963, %v2099
      %v2136 = vmul.f32 %v965, %v2099
      %v2137 = vmul.f32 %v966, %v2099
      %v2138 = vmul.f32 %v967, %v2099
      %v2139 = vmul.f32 %v969, %v2099
      %v2140 = vmul.f32 %v970, %v2099
      %v2141 = vmul.f32 %v971, %v2099
      %v2142 = vmul.f32 %v973, %v2099
      %v2143 = vmul.f32 %v974, %v2099
      %v2144 = vmul.f32 %v975, %v2099
      %v2145 = vmul.f32 %v977, %v2099
      %v2146 = vmul.f32 %v978, %v2099
      %v2147 = vmul.f32 %v979, %v2099
      %v2148 = vadd.f32 %v2051, %v2100
      %v2149 = vadd.f32 %v2052, %v2101
      %v2150 = vadd.f32 %v2053, %v2102
      %v2151 = vadd.f32 %v2054, %v2103
      %v2152 = vadd.f32 %v2055, %v2104
      %v2153 = vadd.f32 %v2056, %v2105
      %v2154 = vadd.f32 %v2057, %v2106
      %v2155 = vadd.f32 %v2058, %v2107
      %v2156 = vadd.f32 %v2059, %v2108
      %v2157 = vadd.f32 %v2060, %v2109
      %v2158 = vadd.f32 %v2061, %v2110
      %v2159 = vadd.f32 %v2062, %v2111
      %v2160 = vadd.f32 %v2063, %v2112
      %v2161 = vadd.f32 %v2064, %v2113
      %v2162 = vadd.f32 %v2065, %v2114
      %v2163 = vadd.f32 %v2066, %v2115
      %v2164 = vadd.f32 %v2067, %v2116
      %v2165 = vadd.f32 %v2068, %v2117
      %v2166 = vadd.f32 %v2069, %v2118
      %v2167 = vadd.f32 %v2070, %v2119
      %v2168 = vadd.f32 %v2071, %v2120
      %v2169 = vadd.f32 %v2072, %v2121
      %v2170 = vadd.f32 %v2073, %v2122
      %v2171 = vadd.f32 %v2074, %v2123
      %v2172 = vadd.f32 %v2075, %v2124
      %v2173 = vadd.f32 %v2076, %v2125
      %v2174 = vadd.f32 %v2077, %v2126
      %v2175 = vadd.f32 %v2078, %v2127
      %v2176 = vadd.f32 %v2079, %v2128
      %v2177 = vadd.f32 %v2080, %v2129
      %v2178 = vadd.f32 %v2081, %v2130
      %v2179 = vadd.f32 %v2082, %v2131
      %v2180 = vadd.f32 %v2083, %v2132
      %v2181 = vadd.f32 %v2084, %v2133
      %v2182 = vadd.f32 %v2085, %v2134
      %v2183 = vadd.f32 %v2086, %v2135
      %v2184 = vadd.f32 %v2087, %v2136
      %v2185 = vadd.f32 %v2088, %v2137
      %v2186 = vadd.f32 %v2089, %v2138
      %v2187 = vadd.f32 %v2090, %v2139
      %v2188 = vadd.f32 %v2091, %v2140
      %v2189 = vadd.f32 %v2092, %v2141
      %v2190 = vadd.f32 %v2093, %v2142
      %v2191 = vadd.f32 %v2094, %v2143
      %v2192 = vadd.f32 %v2095, %v2144
      %v2193 = vadd.f32 %v2096, %v2145
      %v2194 = vadd.f32 %v2097, %v2146
      %v2195 = vadd.f32 %v2098, %v2147
      %v2196 = vperm.slane %v986, 1
      %v2197 = vmul.f32 %v918, %v2196
      %v2198 = vmul.f32 %v919, %v2196
      %v2199 = vmul.f32 %v922, %v2196
      %v2200 = vmul.f32 %v923, %v2196
      %v2201 = vmul.f32 %v926, %v2196
      %v2202 = vmul.f32 %v927, %v2196
      %v2203 = vmul.f32 %v930, %v2196
      %v2204 = vmul.f32 %v931, %v2196
      %v2205 = vmul.f32 %v934, %v2196
      %v2206 = vmul.f32 %v935, %v2196
      %v2207 = vmul.f32 %v938, %v2196
      %v2208 = vmul.f32 %v939, %v2196
      %v2209 = vmul.f32 %v942, %v2196
      %v2210 = vmul.f32 %v943, %v2196
      %v2211 = vmul.f32 %v946, %v2196
      %v2212 = vmul.f32 %v947, %v2196
      %v2213 = vmul.f32 %v950, %v2196
      %v2214 = vmul.f32 %v951, %v2196
      %v2215 = vmul.f32 %v954, %v2196
      %v2216 = vmul.f32 %v955, %v2196
      %v2217 = vmul.f32 %v958, %v2196
      %v2218 = vmul.f32 %v959, %v2196
      %v2219 = vmul.f32 %v962, %v2196
      %v2220 = vmul.f32 %v963, %v2196
      %v2221 = vmul.f32 %v966, %v2196
      %v2222 = vmul.f32 %v967, %v2196
      %v2223 = vmul.f32 %v970, %v2196
      %v2224 = vmul.f32 %v971, %v2196
      %v2225 = vmul.f32 %v974, %v2196
      %v2226 = vmul.f32 %v975, %v2196
      %v2227 = vmul.f32 %v978, %v2196
      %v2228 = vmul.f32 %v979, %v2196
      %v2261 = vrot.slane %v2197, 1
      %v2262 = vrot.slane %v2198, 1
      %v2263 = vsel %vm1101, %v2261, %v2262
      %v2264 = vrot.slane %v2199, 1
      %v2265 = vrot.slane %v2200, 1
      %v2266 = vsel %vm1101, %v2264, %v2265
      %v2267 = vrot.slane %v2201, 1
      %v2268 = vrot.slane %v2202, 1
      %v2269 = vsel %vm1101, %v2267, %v2268
      %v2270 = vrot.slane %v2203, 1
      %v2271 = vrot.slane %v2204, 1
      %v2272 = vsel %vm1101, %v2270, %v2271
      %v2273 = vrot.slane %v2205, 1
      %v2274 = vrot.slane %v2206, 1
      %v2275 = vsel %vm1101, %v2273, %v2274
      %v2276 = vrot.slane %v2207, 1
      %v2277 = vrot.slane %v2208, 1
      %v2278 = vsel %vm1101, %v2276, %v2277
      %v2279 = vrot.slane %v2209, 1
      %v2280 = vrot.slane %v2210, 1
      %v2281 = vsel %vm1101, %v2279, %v2280
      %v2282 = vrot.slane %v2211, 1
      %v2283 = vrot.slane %v2212, 1
      %v2284 = vsel %vm1101, %v2282, %v2283
      %v2285 = vrot.slane %v2213, 1
      %v2286 = vrot.slane %v2214, 1
      %v2287 = vsel %vm1101, %v2285, %v2286
      %v2288 = vrot.slane %v2215, 1
      %v2289 = vrot.slane %v2216, 1
      %v2290 = vsel %vm1101, %v2288, %v2289
      %v2291 = vrot.slane %v2217, 1
      %v2292 = vrot.slane %v2218, 1
      %v2293 = vsel %vm1101, %v2291, %v2292
      %v2294 = vrot.slane %v2219, 1
      %v2295 = vrot.slane %v2220, 1
      %v2296 = vsel %vm1101, %v2294, %v2295
      %v2297 = vrot.slane %v2221, 1
      %v2298 = vrot.slane %v2222, 1
      %v2299 = vsel %vm1101, %v2297, %v2298
      %v2300 = vrot.slane %v2223, 1
      %v2301 = vrot.slane %v2224, 1
      %v2302 = vsel %vm1101, %v2300, %v2301
      %v2303 = vrot.slane %v2225, 1
      %v2304 = vrot.slane %v2226, 1
      %v2305 = vsel %vm1101, %v2303, %v2304
      %v2306 = vrot.slane %v2227, 1
      %v2307 = vrot.slane %v2228, 1
      %v2308 = vsel %vm1101, %v2306, %v2307
      %v2357 = vadd.f32 %v2148, %v2261
      %v2358 = vadd.f32 %v2149, %v2263
      %v2359 = vadd.f32 %v2150, %v2262
      %v2360 = vadd.f32 %v2151, %v2264
      %v2361 = vadd.f32 %v2152, %v2266
      %v2362 = vadd.f32 %v2153, %v2265
      %v2363 = vadd.f32 %v2154, %v2267
      %v2364 = vadd.f32 %v2155, %v2269
      %v2365 = vadd.f32 %v2156, %v2268
      %v2366 = vadd.f32 %v2157, %v2270
      %v2367 = vadd.f32 %v2158, %v2272
      %v2368 = vadd.f32 %v2159, %v2271
      %v2369 = vadd.f32 %v2160, %v2273
      %v2370 = vadd.f32 %v2161, %v2275
      %v2371 = vadd.f32 %v2162, %v2274
      %v2372 = vadd.f32 %v2163, %v2276
      %v2373 = vadd.f32 %v2164, %v2278
      %v2374 = vadd.f32 %v2165, %v2277
      %v2375 = vadd.f32 %v2166, %v2279
      %v2376 = vadd.f32 %v2167, %v2281
      %v2377 = vadd.f32 %v2168, %v2280
      %v2378 = vadd.f32 %v2169, %v2282
      %v2379 = vadd.f32 %v2170, %v2284
      %v2380 = vadd.f32 %v2171, %v2283
      %v2381 = vadd.f32 %v2172, %v2285
      %v2382 = vadd.f32 %v2173, %v2287
      %v2383 = vadd.f32 %v2174, %v2286
      %v2384 = vadd.f32 %v2175, %v2288
      %v2385 = vadd.f32 %v2176, %v2290
      %v2386 = vadd.f32 %v2177, %v2289
      %v2387 = vadd.f32 %v2178, %v2291
      %v2388 = vadd.f32 %v2179, %v2293
      %v2389 = vadd.f32 %v2180, %v2292
      %v2390 = vadd.f32 %v2181, %v2294
      %v2391 = vadd.f32 %v2182, %v2296
      %v2392 = vadd.f32 %v2183, %v2295
      %v2393 = vadd.f32 %v2184, %v2297
      %v2394 = vadd.f32 %v2185, %v2299
      %v2395 = vadd.f32 %v2186, %v2298
      %v2396 = vadd.f32 %v2187, %v2300
      %v2397 = vadd.f32 %v2188, %v2302
      %v2398 = vadd.f32 %v2189, %v2301
      %v2399 = vadd.f32 %v2190, %v2303
      %v2400 = vadd.f32 %v2191, %v2305
      %v2401 = vadd.f32 %v2192, %v2304
      %v2402 = vadd.f32 %v2193, %v2306
      %v2403 = vadd.f32 %v2194, %v2308
      %v2404 = vadd.f32 %v2195, %v2307
      %v2405 = vperm.slane %v986, 2
      %v2406 = vmul.f32 %v918, %v2405
      %v2407 = vmul.f32 %v919, %v2405
      %v2408 = vmul.f32 %v920, %v2405
      %v2409 = vmul.f32 %v922, %v2405
      %v2410 = vmul.f32 %v923, %v2405
      %v2411 = vmul.f32 %v924, %v2405
      %v2412 = vmul.f32 %v926, %v2405
      %v2413 = vmul.f32 %v927, %v2405
      %v2414 = vmul.f32 %v928, %v2405
      %v2415 = vmul.f32 %v930, %v2405
      %v2416 = vmul.f32 %v931, %v2405
      %v2417 = vmul.f32 %v932, %v2405
      %v2418 = vmul.f32 %v934, %v2405
      %v2419 = vmul.f32 %v935, %v2405
      %v2420 = vmul.f32 %v936, %v2405
      %v2421 = vmul.f32 %v938, %v2405
      %v2422 = vmul.f32 %v939, %v2405
      %v2423 = vmul.f32 %v940, %v2405
      %v2424 = vmul.f32 %v942, %v2405
      %v2425 = vmul.f32 %v943, %v2405
      %v2426 = vmul.f32 %v944, %v2405
      %v2427 = vmul.f32 %v946, %v2405
      %v2428 = vmul.f32 %v947, %v2405
      %v2429 = vmul.f32 %v948, %v2405
      %v2430 = vmul.f32 %v950, %v2405
      %v2431 = vmul.f32 %v951, %v2405
      %v2432 = vmul.f32 %v952, %v2405
      %v2433 = vmul.f32 %v954, %v2405
      %v2434 = vmul.f32 %v955, %v2405
      %v2435 = vmul.f32 %v956, %v2405
      %v2436 = vmul.f32 %v958, %v2405
      %v2437 = vmul.f32 %v959, %v2405
      %v2438 = vmul.f32 %v960, %v2405
      %v2439 = vmul.f32 %v962, %v2405
      %v2440 = vmul.f32 %v963, %v2405
      %v2441 = vmul.f32 %v964, %v2405
      %v2442 = vmul.f32 %v966, %v2405
      %v2443 = vmul.f32 %v967, %v2405
      %v2444 = vmul.f32 %v968, %v2405
      %v2445 = vmul.f32 %v970, %v2405
      %v2446 = vmul.f32 %v971, %v2405
      %v2447 = vmul.f32 %v972, %v2405
      %v2448 = vmul.f32 %v974, %v2405
      %v2449 = vmul.f32 %v975, %v2405
      %v2450 = vmul.f32 %v976, %v2405
      %v2451 = vmul.f32 %v978, %v2405
      %v2452 = vmul.f32 %v979, %v2405
      %v2453 = vmul.f32 %v980, %v2405
      %v2502 = vrot.slane %v2406, 2
      %v2503 = vrot.slane %v2407, 2
      %v2504 = vsel %vm1343, %v2502, %v2503
      %v2505 = vrot.slane %v2408, 2
      %v2506 = vsel %vm1343, %v2503, %v2505
      %v2507 = vrot.slane %v2409, 2
      %v2508 = vrot.slane %v2410, 2
      %v2509 = vsel %vm1343, %v2507, %v2508
      %v2510 = vrot.slane %v2411, 2
      %v2511 = vsel %vm1343, %v2508, %v2510
      %v2512 = vrot.slane %v2412, 2
      %v2513 = vrot.slane %v2413, 2
      %v2514 = vsel %vm1343, %v2512, %v2513
      %v2515 = vrot.slane %v2414, 2
      %v2516 = vsel %vm1343, %v2513, %v2515
      %v2517 = vrot.slane %v2415, 2
      %v2518 = vrot.slane %v2416, 2
      %v2519 = vsel %vm1343, %v2517, %v2518
      %v2520 = vrot.slane %v2417, 2
      %v2521 = vsel %vm1343, %v2518, %v2520
      %v2522 = vrot.slane %v2418, 2
      %v2523 = vrot.slane %v2419, 2
      %v2524 = vsel %vm1343, %v2522, %v2523
      %v2525 = vrot.slane %v2420, 2
      %v2526 = vsel %vm1343, %v2523, %v2525
      %v2527 = vrot.slane %v2421, 2
      %v2528 = vrot.slane %v2422, 2
      %v2529 = vsel %vm1343, %v2527, %v2528
      %v2530 = vrot.slane %v2423, 2
      %v2531 = vsel %vm1343, %v2528, %v2530
      %v2532 = vrot.slane %v2424, 2
      %v2533 = vrot.slane %v2425, 2
      %v2534 = vsel %vm1343, %v2532, %v2533
      %v2535 = vrot.slane %v2426, 2
      %v2536 = vsel %vm1343, %v2533, %v2535
      %v2537 = vrot.slane %v2427, 2
      %v2538 = vrot.slane %v2428, 2
      %v2539 = vsel %vm1343, %v2537, %v2538
      %v2540 = vrot.slane %v2429, 2
      %v2541 = vsel %vm1343, %v2538, %v2540
      %v2542 = vrot.slane %v2430, 2
      %v2543 = vrot.slane %v2431, 2
      %v2544 = vsel %vm1343, %v2542, %v2543
      %v2545 = vrot.slane %v2432, 2
      %v2546 = vsel %vm1343, %v2543, %v2545
      %v2547 = vrot.slane %v2433, 2
      %v2548 = vrot.slane %v2434, 2
      %v2549 = vsel %vm1343, %v2547, %v2548
      %v2550 = vrot.slane %v2435, 2
      %v2551 = vsel %vm1343, %v2548, %v2550
      %v2552 = vrot.slane %v2436, 2
      %v2553 = vrot.slane %v2437, 2
      %v2554 = vsel %vm1343, %v2552, %v2553
      %v2555 = vrot.slane %v2438, 2
      %v2556 = vsel %vm1343, %v2553, %v2555
      %v2557 = vrot.slane %v2439, 2
      %v2558 = vrot.slane %v2440, 2
      %v2559 = vsel %vm1343, %v2557, %v2558
      %v2560 = vrot.slane %v2441, 2
      %v2561 = vsel %vm1343, %v2558, %v2560
      %v2562 = vrot.slane %v2442, 2
      %v2563 = vrot.slane %v2443, 2
      %v2564 = vsel %vm1343, %v2562, %v2563
      %v2565 = vrot.slane %v2444, 2
      %v2566 = vsel %vm1343, %v2563, %v2565
      %v2567 = vrot.slane %v2445, 2
      %v2568 = vrot.slane %v2446, 2
      %v2569 = vsel %vm1343, %v2567, %v2568
      %v2570 = vrot.slane %v2447, 2
      %v2571 = vsel %vm1343, %v2568, %v2570
      %v2572 = vrot.slane %v2448, 2
      %v2573 = vrot.slane %v2449, 2
      %v2574 = vsel %vm1343, %v2572, %v2573
      %v2575 = vrot.slane %v2450, 2
      %v2576 = vsel %vm1343, %v2573, %v2575
      %v2577 = vrot.slane %v2451, 2
      %v2578 = vrot.slane %v2452, 2
      %v2579 = vsel %vm1343, %v2577, %v2578
      %v2580 = vrot.slane %v2453, 2
      %v2581 = vsel %vm1343, %v2578, %v2580
      %v2630 = vadd.f32 %v2357, %v2502
      %v2631 = vadd.f32 %v2358, %v2504
      %v2632 = vadd.f32 %v2359, %v2506
      %v2633 = vadd.f32 %v2360, %v2507
      %v2634 = vadd.f32 %v2361, %v2509
      %v2635 = vadd.f32 %v2362, %v2511
      %v2636 = vadd.f32 %v2363, %v2512
      %v2637 = vadd.f32 %v2364, %v2514
      %v2638 = vadd.f32 %v2365, %v2516
      %v2639 = vadd.f32 %v2366, %v2517
      %v2640 = vadd.f32 %v2367, %v2519
      %v2641 = vadd.f32 %v2368, %v2521
      %v2642 = vadd.f32 %v2369, %v2522
      %v2643 = vadd.f32 %v2370, %v2524
      %v2644 = vadd.f32 %v2371, %v2526
      %v2645 = vadd.f32 %v2372, %v2527
      %v2646 = vadd.f32 %v2373, %v2529
      %v2647 = vadd.f32 %v2374, %v2531
      %v2648 = vadd.f32 %v2375, %v2532
      %v2649 = vadd.f32 %v2376, %v2534
      %v2650 = vadd.f32 %v2377, %v2536
      %v2651 = vadd.f32 %v2378, %v2537
      %v2652 = vadd.f32 %v2379, %v2539
      %v2653 = vadd.f32 %v2380, %v2541
      %v2654 = vadd.f32 %v2381, %v2542
      %v2655 = vadd.f32 %v2382, %v2544
      %v2656 = vadd.f32 %v2383, %v2546
      %v2657 = vadd.f32 %v2384, %v2547
      %v2658 = vadd.f32 %v2385, %v2549
      %v2659 = vadd.f32 %v2386, %v2551
      %v2660 = vadd.f32 %v2387, %v2552
      %v2661 = vadd.f32 %v2388, %v2554
      %v2662 = vadd.f32 %v2389, %v2556
      %v2663 = vadd.f32 %v2390, %v2557
      %v2664 = vadd.f32 %v2391, %v2559
      %v2665 = vadd.f32 %v2392, %v2561
      %v2666 = vadd.f32 %v2393, %v2562
      %v2667 = vadd.f32 %v2394, %v2564
      %v2668 = vadd.f32 %v2395, %v2566
      %v2669 = vadd.f32 %v2396, %v2567
      %v2670 = vadd.f32 %v2397, %v2569
      %v2671 = vadd.f32 %v2398, %v2571
      %v2672 = vadd.f32 %v2399, %v2572
      %v2673 = vadd.f32 %v2400, %v2574
      %v2674 = vadd.f32 %v2401, %v2576
      %v2675 = vadd.f32 %v2402, %v2577
      %v2676 = vadd.f32 %v2403, %v2579
      %v2677 = vadd.f32 %v2404, %v2581
      %vm2726 = vcmask 1040384
      %v2727 = vrot.slane %v2630, 7
      %v2728 = vrot.slane %v2631, 7
      %v2729 = vsel %vm2726, %v2727, %v2728
      %v2730 = vrot.slane %v2632, 7
      %v2731 = vsel %vm2726, %v2728, %v2730
      %v2732 = vrot.slane %v2633, 7
      %v2733 = vrot.slane %v2634, 7
      %v2734 = vsel %vm2726, %v2732, %v2733
      %v2735 = vrot.slane %v2635, 7
      %v2736 = vsel %vm2726, %v2733, %v2735
      %v2737 = vrot.slane %v2636, 7
      %v2738 = vrot.slane %v2637, 7
      %v2739 = vsel %vm2726, %v2737, %v2738
      %v2740 = vrot.slane %v2638, 7
      %v2741 = vsel %vm2726, %v2738, %v2740
      %v2742 = vrot.slane %v2639, 7
      %v2743 = vrot.slane %v2640, 7
      %v2744 = vsel %vm2726, %v2742, %v2743
      %v2745 = vrot.slane %v2641, 7
      %v2746 = vsel %vm2726, %v2743, %v2745
      %v2747 = vrot.slane %v2642, 7
      %v2748 = vrot.slane %v2643, 7
      %v2749 = vsel %vm2726, %v2747, %v2748
      %v2750 = vrot.slane %v2644, 7
      %v2751 = vsel %vm2726, %v2748, %v2750
      %v2752 = vrot.slane %v2645, 7
      %v2753 = vrot.slane %v2646, 7
      %v2754 = vsel %vm2726, %v2752, %v2753
      %v2755 = vrot.slane %v2647, 7
      %v2756 = vsel %vm2726, %v2753, %v2755
      %v2757 = vrot.slane %v2648, 7
      %v2758 = vrot.slane %v2649, 7
      %v2759 = vsel %vm2726, %v2757, %v2758
      %v2760 = vrot.slane %v2650, 7
      %v2761 = vsel %vm2726, %v2758, %v2760
      %v2762 = vrot.slane %v2651, 7
      %v2763 = vrot.slane %v2652, 7
      %v2764 = vsel %vm2726, %v2762, %v2763
      %v2765 = vrot.slane %v2653, 7
      %v2766 = vsel %vm2726, %v2763, %v2765
      %v2767 = vrot.slane %v2654, 7
      %v2768 = vrot.slane %v2655, 7
      %v2769 = vsel %vm2726, %v2767, %v2768
      %v2770 = vrot.slane %v2656, 7
      %v2771 = vsel %vm2726, %v2768, %v2770
      %v2772 = vrot.slane %v2657, 7
      %v2773 = vrot.slane %v2658, 7
      %v2774 = vsel %vm2726, %v2772, %v2773
      %v2775 = vrot.slane %v2659, 7
      %v2776 = vsel %vm2726, %v2773, %v2775
      %v2777 = vrot.slane %v2660, 7
      %v2778 = vrot.slane %v2661, 7
      %v2779 = vsel %vm2726, %v2777, %v2778
      %v2780 = vrot.slane %v2662, 7
      %v2781 = vsel %vm2726, %v2778, %v2780
      %v2782 = vrot.slane %v2663, 7
      %v2783 = vrot.slane %v2664, 7
      %v2784 = vsel %vm2726, %v2782, %v2783
      %v2785 = vrot.slane %v2665, 7
      %v2786 = vsel %vm2726, %v2783, %v2785
      %v2787 = vrot.slane %v2666, 7
      %v2788 = vrot.slane %v2667, 7
      %v2789 = vsel %vm2726, %v2787, %v2788
      %v2790 = vrot.slane %v2668, 7
      %v2791 = vsel %vm2726, %v2788, %v2790
      %v2792 = vrot.slane %v2669, 7
      %v2793 = vrot.slane %v2670, 7
      %v2794 = vsel %vm2726, %v2792, %v2793
      %v2795 = vrot.slane %v2671, 7
      %v2796 = vsel %vm2726, %v2793, %v2795
      %v2797 = vrot.slane %v2672, 7
      %v2798 = vrot.slane %v2673, 7
      %v2799 = vsel %vm2726, %v2797, %v2798
      %v2800 = vrot.slane %v2674, 7
      %v2801 = vsel %vm2726, %v2798, %v2800
      %v2802 = vrot.slane %v2675, 7
      %v2803 = vrot.slane %v2676, 7
      %v2804 = vsel %vm2726, %v2802, %v2803
      %v2805 = vrot.slane %v2677, 7
      %v2806 = vsel %vm2726, %v2803, %v2805
      %v2839 = vld [vmem:[%s5] sm:$0x1]
      %v2841 = vperm.slane %v2839, 0
      %v2843 = vmul.f32 %v2729, %v2841
      %v2844 = vmul.f32 %v2731, %v2841
      %v2845 = vmul.f32 %v2734, %v2841
      %v2846 = vmul.f32 %v2736, %v2841
      %v2847 = vmul.f32 %v2739, %v2841
      %v2848 = vmul.f32 %v2741, %v2841
      %v2849 = vmul.f32 %v2744, %v2841
      %v2850 = vmul.f32 %v2746, %v2841
      %v2851 = vmul.f32 %v2749, %v2841
      %v2852 = vmul.f32 %v2751, %v2841
      %v2853 = vmul.f32 %v2754, %v2841
      %v2854 = vmul.f32 %v2756, %v2841
      %v2855 = vmul.f32 %v2759, %v2841
      %v2856 = vmul.f32 %v2761, %v2841
      %v2857 = vmul.f32 %v2764, %v2841
      %v2858 = vmul.f32 %v2766, %v2841
      %v2859 = vmul.f32 %v2769, %v2841
      %v2860 = vmul.f32 %v2771, %v2841
      %v2861 = vmul.f32 %v2774, %v2841
      %v2862 = vmul.f32 %v2776, %v2841
      %v2863 = vmul.f32 %v2779, %v2841
      %v2864 = vmul.f32 %v2781, %v2841
      %v2865 = vmul.f32 %v2784, %v2841
      %v2866 = vmul.f32 %v2786, %v2841
      %v2867 = vmul.f32 %v2789, %v2841
      %v2868 = vmul.f32 %v2791, %v2841
      %v2869 = vmul.f32 %v2794, %v2841
      %v2870 = vmul.f32 %v2796, %v2841
      %v2871 = vmul.f32 %v2799, %v2841
      %v2872 = vmul.f32 %v2801, %v2841
      %v2873 = vmul.f32 %v2804, %v2841
      %v2874 = vmul.f32 %v2806, %v2841
      %v2875 = vld [vmem:[%s6] sm:$0x1]
      %v2877 = vperm.slane %v2875, 0
      %v2879 = vadd.f32 %v2843, %v2877
      %v2880 = vadd.f32 %v2844, %v2877
      %v2881 = vadd.f32 %v2845, %v2877
      %v2882 = vadd.f32 %v2846, %v2877
      %v2883 = vadd.f32 %v2847, %v2877
      %v2884 = vadd.f32 %v2848, %v2877
      %v2885 = vadd.f32 %v2849, %v2877
      %v2886 = vadd.f32 %v2850, %v2877
      %v2887 = vadd.f32 %v2851, %v2877
      %v2888 = vadd.f32 %v2852, %v2877
      %v2889 = vadd.f32 %v2853, %v2877
      %v2890 = vadd.f32 %v2854, %v2877
      %v2891 = vadd.f32 %v2855, %v2877
      %v2892 = vadd.f32 %v2856, %v2877
      %v2893 = vadd.f32 %v2857, %v2877
      %v2894 = vadd.f32 %v2858, %v2877
      %v2895 = vadd.f32 %v2859, %v2877
      %v2896 = vadd.f32 %v2860, %v2877
      %v2897 = vadd.f32 %v2861, %v2877
      %v2898 = vadd.f32 %v2862, %v2877
      %v2899 = vadd.f32 %v2863, %v2877
      %v2900 = vadd.f32 %v2864, %v2877
      %v2901 = vadd.f32 %v2865, %v2877
      %v2902 = vadd.f32 %v2866, %v2877
      %v2903 = vadd.f32 %v2867, %v2877
      %v2904 = vadd.f32 %v2868, %v2877
      %v2905 = vadd.f32 %v2869, %v2877
      %v2906 = vadd.f32 %v2870, %v2877
      %v2907 = vadd.f32 %v2871, %v2877
      %v2908 = vadd.f32 %v2872, %v2877
      %v2909 = vadd.f32 %v2873, %v2877
      %v2910 = vadd.f32 %v2874, %v2877
      %v2911 = vmax.f32 %v2879, 0.0
      %v2912 = vmax.f32 %v2880, 0.0
      %v2913 = vmax.f32 %v2881, 0.0
      %v2914 = vmax.f32 %v2882, 0.0
      %v2915 = vmax.f32 %v2883, 0.0
      %v2916 = vmax.f32 %v2884, 0.0
      %v2917 = vmax.f32 %v2885, 0.0
      %v2918 = vmax.f32 %v2886, 0.0
      %v2919 = vmax.f32 %v2887, 0.0
      %v2920 = vmax.f32 %v2888, 0.0
      %v2921 = vmax.f32 %v2889, 0.0
      %v2922 = vmax.f32 %v2890, 0.0
      %v2923 = vmax.f32 %v2891, 0.0
      %v2924 = vmax.f32 %v2892, 0.0
      %v2925 = vmax.f32 %v2893, 0.0
      %v2926 = vmax.f32 %v2894, 0.0
      %v2927 = vmax.f32 %v2895, 0.0
      %v2928 = vmax.f32 %v2896, 0.0
      %v2929 = vmax.f32 %v2897, 0.0
      %v2930 = vmax.f32 %v2898, 0.0
      %v2931 = vmax.f32 %v2899, 0.0
      %v2932 = vmax.f32 %v2900, 0.0
      %v2933 = vmax.f32 %v2901, 0.0
      %v2934 = vmax.f32 %v2902, 0.0
      %v2935 = vmax.f32 %v2903, 0.0
      %v2936 = vmax.f32 %v2904, 0.0
      %v2937 = vmax.f32 %v2905, 0.0
      %v2938 = vmax.f32 %v2906, 0.0
      %v2939 = vmax.f32 %v2907, 0.0
      %v2940 = vmax.f32 %v2908, 0.0
      %v2941 = vmax.f32 %v2909, 0.0
      %v2942 = vmax.f32 %v2910, 0.0
      %v2943 = vld [vmem:[%s7] sm:$0xf]
      %v2944 = vld [vmem:[%s7 + $0x4] sm:$0xf]
      %v2945 = vunpack.c.l.bf16 %v2943
      %v2946 = vunpack.c.l.bf16 %v2944
      %v2948 = vsel %vm802, %v2911, 0
      %v2951 = vsel %vm802, %v2912, 0
      %v2954 = vsel %vm802, %v2913, 0
      %v2957 = vsel %vm802, %v2914, 0
      %v2960 = vsel %vm802, %v2915, 0
      %v2963 = vsel %vm802, %v2916, 0
      %v2966 = vsel %vm802, %v2917, 0
      %v2969 = vsel %vm802, %v2918, 0
      %v2972 = vsel %vm802, %v2919, 0
      %v2975 = vsel %vm802, %v2920, 0
      %v2978 = vsel %vm802, %v2921, 0
      %v2981 = vsel %vm802, %v2922, 0
      %v2984 = vsel %vm802, %v2923, 0
      %v2987 = vsel %vm802, %v2924, 0
      %v2990 = vsel %vm802, %v2925, 0
      %v2993 = vsel %vm802, %v2926, 0
      %v2996 = vsel %vm802, %v2927, 0
      %v2999 = vsel %vm802, %v2928, 0
      %v3002 = vsel %vm802, %v2929, 0
      %v3005 = vsel %vm802, %v2930, 0
      %v3008 = vsel %vm802, %v2931, 0
      %v3011 = vsel %vm802, %v2932, 0
      %v3014 = vsel %vm802, %v2933, 0
      %v3017 = vsel %vm802, %v2934, 0
      %v3020 = vsel %vm802, %v2935, 0
      %v3023 = vsel %vm802, %v2936, 0
      %v3026 = vsel %vm802, %v2937, 0
      %v3029 = vsel %vm802, %v2938, 0
      %v3032 = vsel %vm802, %v2939, 0
      %v3035 = vsel %vm802, %v2940, 0
      %v3038 = vsel %vm802, %v2941, 0
      %v3041 = vsel %vm802, %v2942, 0
      %3043 = vmatpush.msra.mxu0 0.0
      %3044 = vmatpush.msra.mxu0 0.0
      %3045 = vmatpush.msra.mxu0 0.0
      %3046 = vmatpush.msra.mxu0 0.0
      %3047 = vmatpush.msra.mxu0 0.0
      %3048 = vmatpush.msra.mxu0 0.0
      %3049 = vmatpush.msra.mxu0 0.0
      %3050 = vmatpush.msra.mxu0 0.0
      %3051 = vmatpush.msra.mxu0 0.0
      %3052 = vmatpush.msra.mxu0 0.0
      %3053 = vmatpush.msra.mxu0 0.0
      %3054 = vmatpush.msra.mxu0 0.0
      %3055 = vmatpush.msra.mxu0 0.0
      %3056 = vmatpush.msra.mxu0 0.0
      %3057 = vmatpush.msra.mxu0 %v2946
      %3058 = vmatpush.msra.mxu0 %v2945
      %3059 = vmatmul.f32.gmra.mxu0 %v2948
      %v3060 = vpop.f32.mrf.mxu0
      %v3061 = vadd.f32 0.0, %v3060
      %3062 = vmatmul.f32.gmra.mxu0 %v2951
      %v3063 = vpop.f32.mrf.mxu0
      %v3064 = vadd.f32 0.0, %v3063
      %3065 = vmatmul.f32.gmra.mxu0 %v2954
      %v3066 = vpop.f32.mrf.mxu0
      %v3067 = vadd.f32 0.0, %v3066
      %3068 = vmatmul.f32.gmra.mxu0 %v2957
      %v3069 = vpop.f32.mrf.mxu0
      %v3070 = vadd.f32 0.0, %v3069
      %3071 = vmatmul.f32.gmra.mxu0 %v2960
      %v3072 = vpop.f32.mrf.mxu0
      %v3073 = vadd.f32 0.0, %v3072
      %3074 = vmatmul.f32.gmra.mxu0 %v2963
      %v3075 = vpop.f32.mrf.mxu0
      %v3076 = vadd.f32 0.0, %v3075
      %3077 = vmatmul.f32.gmra.mxu0 %v2966
      %v3078 = vpop.f32.mrf.mxu0
      %v3079 = vadd.f32 0.0, %v3078
      %3080 = vmatmul.f32.gmra.mxu0 %v2969
      %v3081 = vpop.f32.mrf.mxu0
      %v3082 = vadd.f32 0.0, %v3081
      %3083 = vmatmul.f32.gmra.mxu0 %v2972
      %v3084 = vpop.f32.mrf.mxu0
      %v3085 = vadd.f32 0.0, %v3084
      %3086 = vmatmul.f32.gmra.mxu0 %v2975
      %v3087 = vpop.f32.mrf.mxu0
      %v3088 = vadd.f32 0.0, %v3087
      %3089 = vmatmul.f32.gmra.mxu0 %v2978
      %v3090 = vpop.f32.mrf.mxu0
      %v3091 = vadd.f32 0.0, %v3090
      %3092 = vmatmul.f32.gmra.mxu0 %v2981
      %v3093 = vpop.f32.mrf.mxu0
      %v3094 = vadd.f32 0.0, %v3093
      %3095 = vmatmul.f32.gmra.mxu0 %v2984
      %v3096 = vpop.f32.mrf.mxu0
      %v3097 = vadd.f32 0.0, %v3096
      %3098 = vmatmul.f32.gmra.mxu0 %v2987
      %v3099 = vpop.f32.mrf.mxu0
      %v3100 = vadd.f32 0.0, %v3099
      %3101 = vmatmul.f32.gmra.mxu0 %v2990
      %v3102 = vpop.f32.mrf.mxu0
      %v3103 = vadd.f32 0.0, %v3102
      %3104 = vmatmul.f32.gmra.mxu0 %v2993
      %v3105 = vpop.f32.mrf.mxu0
      %v3106 = vadd.f32 0.0, %v3105
      %3107 = vmatmul.f32.gmra.mxu0 %v2996
      %v3108 = vpop.f32.mrf.mxu0
      %v3109 = vadd.f32 0.0, %v3108
      %3110 = vmatmul.f32.gmra.mxu0 %v2999
      %v3111 = vpop.f32.mrf.mxu0
      %v3112 = vadd.f32 0.0, %v3111
      %3113 = vmatmul.f32.gmra.mxu0 %v3002
      %v3114 = vpop.f32.mrf.mxu0
      %v3115 = vadd.f32 0.0, %v3114
      %3116 = vmatmul.f32.gmra.mxu0 %v3005
      %v3117 = vpop.f32.mrf.mxu0
      %v3118 = vadd.f32 0.0, %v3117
      %3119 = vmatmul.f32.gmra.mxu0 %v3008
      %v3120 = vpop.f32.mrf.mxu0
      %v3121 = vadd.f32 0.0, %v3120
      %3122 = vmatmul.f32.gmra.mxu0 %v3011
      %v3123 = vpop.f32.mrf.mxu0
      %v3124 = vadd.f32 0.0, %v3123
      %3125 = vmatmul.f32.gmra.mxu0 %v3014
      %v3126 = vpop.f32.mrf.mxu0
      %v3127 = vadd.f32 0.0, %v3126
      %3128 = vmatmul.f32.gmra.mxu0 %v3017
      %v3129 = vpop.f32.mrf.mxu0
      %v3130 = vadd.f32 0.0, %v3129
      %3131 = vmatmul.f32.gmra.mxu0 %v3020
      %v3132 = vpop.f32.mrf.mxu0
      %v3133 = vadd.f32 0.0, %v3132
      %3134 = vmatmul.f32.gmra.mxu0 %v3023
      %v3135 = vpop.f32.mrf.mxu0
      %v3136 = vadd.f32 0.0, %v3135
      %3137 = vmatmul.f32.gmra.mxu0 %v3026
      %v3138 = vpop.f32.mrf.mxu0
      %v3139 = vadd.f32 0.0, %v3138
      %3140 = vmatmul.f32.gmra.mxu0 %v3029
      %v3141 = vpop.f32.mrf.mxu0
      %v3142 = vadd.f32 0.0, %v3141
      %3143 = vmatmul.f32.gmra.mxu0 %v3032
      %v3144 = vpop.f32.mrf.mxu0
      %v3145 = vadd.f32 0.0, %v3144
      %3146 = vmatmul.f32.gmra.mxu0 %v3035
      %v3147 = vpop.f32.mrf.mxu0
      %v3148 = vadd.f32 0.0, %v3147
      %3149 = vmatmul.f32.gmra.mxu0 %v3038
      %v3150 = vpop.f32.mrf.mxu0
      %v3151 = vadd.f32 0.0, %v3150
      %3152 = vmatmul.f32.gmra.mxu0 %v3041
      %v3153 = vpop.f32.mrf.mxu0
      %v3154 = vadd.f32 0.0, %v3153
      %3155 = vdwg.mxu0
      %v3156 = vld [vmem:[%s8] sm:$0x1]
      %v3158 = vperm.slane %v3156, 0
      %v3160 = vmul.f32 %v3061, %v3158
      %v3161 = vmul.f32 %v3064, %v3158
      %v3162 = vmul.f32 %v3067, %v3158
      %v3163 = vmul.f32 %v3070, %v3158
      %v3164 = vmul.f32 %v3073, %v3158
      %v3165 = vmul.f32 %v3076, %v3158
      %v3166 = vmul.f32 %v3079, %v3158
      %v3167 = vmul.f32 %v3082, %v3158
      %v3168 = vmul.f32 %v3085, %v3158
      %v3169 = vmul.f32 %v3088, %v3158
      %v3170 = vmul.f32 %v3091, %v3158
      %v3171 = vmul.f32 %v3094, %v3158
      %v3172 = vmul.f32 %v3097, %v3158
      %v3173 = vmul.f32 %v3100, %v3158
      %v3174 = vmul.f32 %v3103, %v3158
      %v3175 = vmul.f32 %v3106, %v3158
      %v3176 = vmul.f32 %v3109, %v3158
      %v3177 = vmul.f32 %v3112, %v3158
      %v3178 = vmul.f32 %v3115, %v3158
      %v3179 = vmul.f32 %v3118, %v3158
      %v3180 = vmul.f32 %v3121, %v3158
      %v3181 = vmul.f32 %v3124, %v3158
      %v3182 = vmul.f32 %v3127, %v3158
      %v3183 = vmul.f32 %v3130, %v3158
      %v3184 = vmul.f32 %v3133, %v3158
      %v3185 = vmul.f32 %v3136, %v3158
      %v3186 = vmul.f32 %v3139, %v3158
      %v3187 = vmul.f32 %v3142, %v3158
      %v3188 = vmul.f32 %v3145, %v3158
      %v3189 = vmul.f32 %v3148, %v3158
      %v3190 = vmul.f32 %v3151, %v3158
      %v3191 = vmul.f32 %v3154, %v3158
      %v3192 = vld [vmem:[%s9] sm:$0x1]
      %v3194 = vperm.slane %v3192, 0
      %v3196 = vadd.f32 %v3160, %v3194
      %v3197 = vadd.f32 %v3161, %v3194
      %v3198 = vadd.f32 %v3162, %v3194
      %v3199 = vadd.f32 %v3163, %v3194
      %v3200 = vadd.f32 %v3164, %v3194
      %v3201 = vadd.f32 %v3165, %v3194
      %v3202 = vadd.f32 %v3166, %v3194
      %v3203 = vadd.f32 %v3167, %v3194
      %v3204 = vadd.f32 %v3168, %v3194
      %v3205 = vadd.f32 %v3169, %v3194
      %v3206 = vadd.f32 %v3170, %v3194
      %v3207 = vadd.f32 %v3171, %v3194
      %v3208 = vadd.f32 %v3172, %v3194
      %v3209 = vadd.f32 %v3173, %v3194
      %v3210 = vadd.f32 %v3174, %v3194
      %v3211 = vadd.f32 %v3175, %v3194
      %v3212 = vadd.f32 %v3176, %v3194
      %v3213 = vadd.f32 %v3177, %v3194
      %v3214 = vadd.f32 %v3178, %v3194
      %v3215 = vadd.f32 %v3179, %v3194
      %v3216 = vadd.f32 %v3180, %v3194
      %v3217 = vadd.f32 %v3181, %v3194
      %v3218 = vadd.f32 %v3182, %v3194
      %v3219 = vadd.f32 %v3183, %v3194
      %v3220 = vadd.f32 %v3184, %v3194
      %v3221 = vadd.f32 %v3185, %v3194
      %v3222 = vadd.f32 %v3186, %v3194
      %v3223 = vadd.f32 %v3187, %v3194
      %v3224 = vadd.f32 %v3188, %v3194
      %v3225 = vadd.f32 %v3189, %v3194
      %v3226 = vadd.f32 %v3190, %v3194
      %v3227 = vadd.f32 %v3191, %v3194
      %v3228 = vld [vmem:[%s10] sm:$0x3]
      %v3230 = vsel %vm605, %v3228, 0
      %3232 = vmatpush.bf16.msra.mxu0 0
      %3233 = vmatpush.bf16.msra.mxu0 0
      %3234 = vmatpush.bf16.msra.mxu0 0
      %3235 = vmatpush.bf16.msra.mxu0 0
      %3236 = vmatpush.bf16.msra.mxu0 0
      %3237 = vmatpush.bf16.msra.mxu0 0
      %3238 = vmatpush.bf16.msra.mxu0 0
      %3239 = vmatpush.bf16.msra.mxu0 %v3230
      %3240 = vmatmul.bf16.gmra.mxu0 %v558
      %v3241 = vpop.f32.mrf.mxu0
      %v3242 = vadd.f32 0.0, %v3241
      %v3243 = vpop.f32.mrf.mxu0
      %v3244 = vadd.f32 0.0, %v3243
      %3245 = vmatmul.bf16.gmra.mxu0 %v561
      %v3246 = vpop.f32.mrf.mxu0
      %v3247 = vadd.f32 0.0, %v3246
      %v3248 = vpop.f32.mrf.mxu0
      %v3249 = vadd.f32 0.0, %v3248
      %3250 = vmatmul.bf16.gmra.mxu0 %v564
      %v3251 = vpop.f32.mrf.mxu0
      %v3252 = vadd.f32 0.0, %v3251
      %v3253 = vpop.f32.mrf.mxu0
      %v3254 = vadd.f32 0.0, %v3253
      %3255 = vmatmul.bf16.gmra.mxu0 %v567
      %v3256 = vpop.f32.mrf.mxu0
      %v3257 = vadd.f32 0.0, %v3256
      %v3258 = vpop.f32.mrf.mxu0
      %v3259 = vadd.f32 0.0, %v3258
      %3260 = vmatmul.bf16.gmra.mxu0 %v570
      %v3261 = vpop.f32.mrf.mxu0
      %v3262 = vadd.f32 0.0, %v3261
      %v3263 = vpop.f32.mrf.mxu0
      %v3264 = vadd.f32 0.0, %v3263
      %3265 = vmatmul.bf16.gmra.mxu0 %v573
      %v3266 = vpop.f32.mrf.mxu0
      %v3267 = vadd.f32 0.0, %v3266
      %v3268 = vpop.f32.mrf.mxu0
      %v3269 = vadd.f32 0.0, %v3268
      %3270 = vmatmul.bf16.gmra.mxu0 %v576
      %v3271 = vpop.f32.mrf.mxu0
      %v3272 = vadd.f32 0.0, %v3271
      %v3273 = vpop.f32.mrf.mxu0
      %v3274 = vadd.f32 0.0, %v3273
      %3275 = vmatmul.bf16.gmra.mxu0 %v579
      %v3276 = vpop.f32.mrf.mxu0
      %v3277 = vadd.f32 0.0, %v3276
      %v3278 = vpop.f32.mrf.mxu0
      %v3279 = vadd.f32 0.0, %v3278
      %3280 = vmatmul.bf16.gmra.mxu0 %v582
      %v3281 = vpop.f32.mrf.mxu0
      %v3282 = vadd.f32 0.0, %v3281
      %v3283 = vpop.f32.mrf.mxu0
      %v3284 = vadd.f32 0.0, %v3283
      %3285 = vmatmul.bf16.gmra.mxu0 %v585
      %v3286 = vpop.f32.mrf.mxu0
      %v3287 = vadd.f32 0.0, %v3286
      %v3288 = vpop.f32.mrf.mxu0
      %v3289 = vadd.f32 0.0, %v3288
      %3290 = vmatmul.bf16.gmra.mxu0 %v588
      %v3291 = vpop.f32.mrf.mxu0
      %v3292 = vadd.f32 0.0, %v3291
      %v3293 = vpop.f32.mrf.mxu0
      %v3294 = vadd.f32 0.0, %v3293
      %3295 = vmatmul.bf16.gmra.mxu0 %v591
      %v3296 = vpop.f32.mrf.mxu0
      %v3297 = vadd.f32 0.0, %v3296
      %v3298 = vpop.f32.mrf.mxu0
      %v3299 = vadd.f32 0.0, %v3298
      %3300 = vmatmul.bf16.gmra.mxu0 %v594
      %v3301 = vpop.f32.mrf.mxu0
      %v3302 = vadd.f32 0.0, %v3301
      %v3303 = vpop.f32.mrf.mxu0
      %v3304 = vadd.f32 0.0, %v3303
      %3305 = vmatmul.bf16.gmra.mxu0 %v597
      %v3306 = vpop.f32.mrf.mxu0
      %v3307 = vadd.f32 0.0, %v3306
      %v3308 = vpop.f32.mrf.mxu0
      %v3309 = vadd.f32 0.0, %v3308
      %3310 = vmatmul.bf16.gmra.mxu0 %v600
      %v3311 = vpop.f32.mrf.mxu0
      %v3312 = vadd.f32 0.0, %v3311
      %v3313 = vpop.f32.mrf.mxu0
      %v3314 = vadd.f32 0.0, %v3313
      %3315 = vmatmul.bf16.gmra.mxu0 %v603
      %v3316 = vpop.f32.mrf.mxu0
      %v3317 = vadd.f32 0.0, %v3316
      %v3318 = vpop.f32.mrf.mxu0
      %v3319 = vadd.f32 0.0, %v3318
      %3320 = vdwg.mxu0
      %v3321 = vld [vmem:[%s11] sm:$0x1]
      %v3323 = vperm.slane %v3321, 0
      %v3325 = vmul.f32 %v3242, %v3323
      %v3326 = vmul.f32 %v3244, %v3323
      %v3327 = vmul.f32 %v3247, %v3323
      %v3328 = vmul.f32 %v3249, %v3323
      %v3329 = vmul.f32 %v3252, %v3323
      %v3330 = vmul.f32 %v3254, %v3323
      %v3331 = vmul.f32 %v3257, %v3323
      %v3332 = vmul.f32 %v3259, %v3323
      %v3333 = vmul.f32 %v3262, %v3323
      %v3334 = vmul.f32 %v3264, %v3323
      %v3335 = vmul.f32 %v3267, %v3323
      %v3336 = vmul.f32 %v3269, %v3323
      %v3337 = vmul.f32 %v3272, %v3323
      %v3338 = vmul.f32 %v3274, %v3323
      %v3339 = vmul.f32 %v3277, %v3323
      %v3340 = vmul.f32 %v3279, %v3323
      %v3341 = vmul.f32 %v3282, %v3323
      %v3342 = vmul.f32 %v3284, %v3323
      %v3343 = vmul.f32 %v3287, %v3323
      %v3344 = vmul.f32 %v3289, %v3323
      %v3345 = vmul.f32 %v3292, %v3323
      %v3346 = vmul.f32 %v3294, %v3323
      %v3347 = vmul.f32 %v3297, %v3323
      %v3348 = vmul.f32 %v3299, %v3323
      %v3349 = vmul.f32 %v3302, %v3323
      %v3350 = vmul.f32 %v3304, %v3323
      %v3351 = vmul.f32 %v3307, %v3323
      %v3352 = vmul.f32 %v3309, %v3323
      %v3353 = vmul.f32 %v3312, %v3323
      %v3354 = vmul.f32 %v3314, %v3323
      %v3355 = vmul.f32 %v3317, %v3323
      %v3356 = vmul.f32 %v3319, %v3323
      %v3357 = vld [vmem:[%s12] sm:$0x1]
      %v3359 = vperm.slane %v3357, 0
      %v3361 = vadd.f32 %v3325, %v3359
      %v3362 = vadd.f32 %v3326, %v3359
      %v3363 = vadd.f32 %v3327, %v3359
      %v3364 = vadd.f32 %v3328, %v3359
      %v3365 = vadd.f32 %v3329, %v3359
      %v3366 = vadd.f32 %v3330, %v3359
      %v3367 = vadd.f32 %v3331, %v3359
      %v3368 = vadd.f32 %v3332, %v3359
      %v3369 = vadd.f32 %v3333, %v3359
      %v3370 = vadd.f32 %v3334, %v3359
      %v3371 = vadd.f32 %v3335, %v3359
      %v3372 = vadd.f32 %v3336, %v3359
      %v3373 = vadd.f32 %v3337, %v3359
      %v3374 = vadd.f32 %v3338, %v3359
      %v3375 = vadd.f32 %v3339, %v3359
      %v3376 = vadd.f32 %v3340, %v3359
      %v3377 = vadd.f32 %v3341, %v3359
      %v3378 = vadd.f32 %v3342, %v3359
      %v3379 = vadd.f32 %v3343, %v3359
      %v3380 = vadd.f32 %v3344, %v3359
      %v3381 = vadd.f32 %v3345, %v3359
      %v3382 = vadd.f32 %v3346, %v3359
      %v3383 = vadd.f32 %v3347, %v3359
      %v3384 = vadd.f32 %v3348, %v3359
      %v3385 = vadd.f32 %v3349, %v3359
      %v3386 = vadd.f32 %v3350, %v3359
      %v3387 = vadd.f32 %v3351, %v3359
      %v3388 = vadd.f32 %v3352, %v3359
      %v3389 = vadd.f32 %v3353, %v3359
      %v3390 = vadd.f32 %v3354, %v3359
      %v3391 = vadd.f32 %v3355, %v3359
      %v3392 = vadd.f32 %v3356, %v3359
      %v3393 = vadd.f32 %v3196, %v3361
      %v3394 = vadd.f32 %v3197, %v3362
      %v3395 = vadd.f32 %v3198, %v3363
      %v3396 = vadd.f32 %v3199, %v3364
      %v3397 = vadd.f32 %v3200, %v3365
      %v3398 = vadd.f32 %v3201, %v3366
      %v3399 = vadd.f32 %v3202, %v3367
      %v3400 = vadd.f32 %v3203, %v3368
      %v3401 = vadd.f32 %v3204, %v3369
      %v3402 = vadd.f32 %v3205, %v3370
      %v3403 = vadd.f32 %v3206, %v3371
      %v3404 = vadd.f32 %v3207, %v3372
      %v3405 = vadd.f32 %v3208, %v3373
      %v3406 = vadd.f32 %v3209, %v3374
      %v3407 = vadd.f32 %v3210, %v3375
      %v3408 = vadd.f32 %v3211, %v3376
      %v3409 = vadd.f32 %v3212, %v3377
      %v3410 = vadd.f32 %v3213, %v3378
      %v3411 = vadd.f32 %v3214, %v3379
      %v3412 = vadd.f32 %v3215, %v3380
      %v3413 = vadd.f32 %v3216, %v3381
      %v3414 = vadd.f32 %v3217, %v3382
      %v3415 = vadd.f32 %v3218, %v3383
      %v3416 = vadd.f32 %v3219, %v3384
      %v3417 = vadd.f32 %v3220, %v3385
      %v3418 = vadd.f32 %v3221, %v3386
      %v3419 = vadd.f32 %v3222, %v3387
      %v3420 = vadd.f32 %v3223, %v3388
      %v3421 = vadd.f32 %v3224, %v3389
      %v3422 = vadd.f32 %v3225, %v3390
      %v3423 = vadd.f32 %v3226, %v3391
      %v3424 = vadd.f32 %v3227, %v3392
      %vm3425 = vcmask 64512
      %3426 = vst.msk [vmem:[%s440] sm:$0xff] %vm3425, %v3393
      %3427 = vst.msk [vmem:[%s440 + $0x8] sm:$0xff] %vm3425, %v3394
      %3428 = vst.msk [vmem:[%s440 + $0x10] sm:$0xff] %vm3425, %v3395
      %3429 = vst.msk [vmem:[%s440 + $0x18] sm:$0xff] %vm3425, %v3396
      %3430 = vst.msk [vmem:[%s440 + $0x20] sm:$0xff] %vm3425, %v3397
      %3431 = vst.msk [vmem:[%s440 + $0x28] sm:$0xff] %vm3425, %v3398
      %3432 = vst.msk [vmem:[%s440 + $0x30] sm:$0xff] %vm3425, %v3399
      %3433 = vst.msk [vmem:[%s440 + $0x38] sm:$0xff] %vm3425, %v3400
      %3434 = vst.msk [vmem:[%s440 + $0x40] sm:$0xff] %vm3425, %v3401
      %3435 = vst.msk [vmem:[%s440 + $0x48] sm:$0xff] %vm3425, %v3402
      %3436 = vst.msk [vmem:[%s440 + $0x50] sm:$0xff] %vm3425, %v3403
      %3437 = vst.msk [vmem:[%s440 + $0x58] sm:$0xff] %vm3425, %v3404
      %3438 = vst.msk [vmem:[%s440 + $0x60] sm:$0xff] %vm3425, %v3405
      %3439 = vst.msk [vmem:[%s440 + $0x68] sm:$0xff] %vm3425, %v3406
      %3440 = vst.msk [vmem:[%s440 + $0x70] sm:$0xff] %vm3425, %v3407
      %3441 = vst.msk [vmem:[%s440 + $0x78] sm:$0xff] %vm3425, %v3408
      %3442 = vst.msk [vmem:[%s440 + $0x80] sm:$0xff] %vm3425, %v3409
      %3443 = vst.msk [vmem:[%s440 + $0x88] sm:$0xff] %vm3425, %v3410
      %3444 = vst.msk [vmem:[%s440 + $0x90] sm:$0xff] %vm3425, %v3411
      %3445 = vst.msk [vmem:[%s440 + $0x98] sm:$0xff] %vm3425, %v3412
      %3446 = vst.msk [vmem:[%s440 + $0xa0] sm:$0xff] %vm3425, %v3413
      %3447 = vst.msk [vmem:[%s440 + $0xa8] sm:$0xff] %vm3425, %v3414
      %3448 = vst.msk [vmem:[%s440 + $0xb0] sm:$0xff] %vm3425, %v3415
      %3449 = vst.msk [vmem:[%s440 + $0xb8] sm:$0xff] %vm3425, %v3416
      %3450 = vst.msk [vmem:[%s440 + $0xc0] sm:$0xff] %vm3425, %v3417
      %3451 = vst.msk [vmem:[%s440 + $0xc8] sm:$0xff] %vm3425, %v3418
      %3452 = vst.msk [vmem:[%s440 + $0xd0] sm:$0xff] %vm3425, %v3419
      %3453 = vst.msk [vmem:[%s440 + $0xd8] sm:$0xff] %vm3425, %v3420
      %3454 = vst.msk [vmem:[%s440 + $0xe0] sm:$0xff] %vm3425, %v3421
      %3455 = vst.msk [vmem:[%s440 + $0xe8] sm:$0xff] %vm3425, %v3422
      %3456 = vst.msk [vmem:[%s440 + $0xf0] sm:$0xff] %vm3425, %v3423
      %3457 = vst.msk [vmem:[%s440 + $0xf8] sm:$0xff] %vm3425, %v3424
      %s3458 = smul.u32 32, %s24
      %p3459 = scmp.lt.s32.totalorder %s3458, 63
      %s3460 = scalar_select %p3459, %s3458, 63
      %s3461 = smul.addr %s3460, 8
      %s3462 = scalar_lea.vmem %s13, %s3461
      // Predicated region
      $region73: #{tpu_custom_call.1} parent=71 // pred_check
        %p3463 = pneg %p320
      $region74: #{tpu_custom_call.1} parent=71 // pred_check_branch
        %3465 = sbr.rel (%p3463) target = $region76
      $region75: #{tpu_custom_call.1} parent=71 // pred_region
        %s3466 = smul.u32 32, %s24
      $region76: #{tpu_custom_call.1} parent=71 // pred_fallthru
        _
    $region72: #{tpu_custom_call.1} parent=5 // pred_fallthru
      _
    %p3467 = scmp.le.s32.totalorder 2, %s19
    // Predicated region
    $region77: #{tpu_custom_call.1} parent=5 // pred_check
      %p3468 = pneg %p3467
    $region78: #{tpu_custom_call.1} parent=5 // pred_check_branch
      %3470 = sbr.rel (%p3468) target = $region80
    $region79: #{tpu_custom_call.1} parent=5 // pred_region
      %s3471 = ssub.s32 %s19, 2
      // Predicated region
      $region81: #{tpu_custom_call.1} parent=79 // pred_check
        %p3472 = pneg %p326
      $region82: #{tpu_custom_call.1} parent=79 // pred_check_branch
        %3474 = sbr.rel (%p3472) target = $region84
      $region83: #{tpu_custom_call.1} parent=79 // pred_region
        %s3475 = smul.u32 32, %s25
        %p3476 = scmp.lt.s32.totalorder %s3475, 63
        %s3477 = scalar_select %p3476, %s3475, 63
        %s3478 = smul.addr %s3477, 8
        %s3479 = scalar_lea.vmem %s13, %s3478
      $region84: #{tpu_custom_call.1} parent=79 // pred_fallthru
        _
    $region80: #{tpu_custom_call.1} parent=5 // pred_fallthru
      _
  $region6: #{tpu_custom_call.1} parent=0 // loop_footer
    %s23 = sadd.s32 1, %s19
  $region7: #{tpu_custom_call.1} parent=0 // loop_footer_branch
    %18 = sbr.rel target = $region3
  $region8: #{tpu_custom_call.1} parent=0 // loop_exit
    _

</llo_original>
